<compile_context>
chip_gen: v6e
topology: v6e:2x2x1
jax: 0.10.0
libtpu: 0.0.40
codegen_flags: <defaults>
</compile_context>

<pallas_src>
import numpy as np
import jax
import jax.numpy as jnp
from jax.experimental import pallas as pl
from jax.experimental.pallas import tpu as pltpu

HIDDEN = 128                 # args.hidden_size
ATOM_FDIM = 32
BOND_ONLY_FDIM = 16
BOND_FDIM = BOND_ONLY_FDIM + ATOM_FDIM   # 48 (atom_messages=False)
FEAT_PAD = 128               # feature dims zero-padded to one full lane width
DEPTH = 3                    # args.depth
SUB = 8                      # sublane row padding


def _round_up(n, m):
    return ((n + m - 1) // m) * m


def _vmem():
    return pl.BlockSpec(memory_space=pltpu.MemorySpace.VMEM)


# ------------------------------ fused kernel --------------------------------

def mpn_fused_kernel(fbe_ref, fbo_ref, fa_ref,
                     a2be_ref, a2bo_ref, b2ae_ref, b2ao_ref, scope_ref,
                     wi_ref, wh_ref, woa_ref, woh_ref, bo_ref,
                     mol_ref, atom_ref):
    f32 = jnp.float32
    bf16 = jnp.bfloat16

    wi = wi_ref[...]
    wh = wh_ref[...]
    a2be = a2be_ref[...]
    a2bo = a2bo_ref[...]
    b2ae = b2ae_ref[...]
    b2ao = b2ao_ref[...]

    # input = W_i(f_bonds);  message = ReLU(input)          (W_i bias=False)
    # Bonds are split into reverse pairs: bond 2e -> row e of the "even" half,
    # bond 2e+1 (its reverse) -> row e of the "odd" half.
    inp_e = jnp.dot(fbe_ref[...], wi, preferred_element_type=f32)
    inp_o = jnp.dot(fbo_ref[...], wi, preferred_element_type=f32)
    msg_e = jnp.maximum(inp_e, 0.0)
    msg_o = jnp.maximum(inp_o, 0.0)

    def gather_sum(me, mo):
        # a_message[a] = sum of messages on bonds entering atom a
        #             == index_select_ND(message, a2b).sum(1)
        return (jnp.dot(a2be, me, preferred_element_type=f32)
                + jnp.dot(a2bo, mo, preferred_element_type=f32))

    # depth-1 message-passing steps, fully unrolled inside the kernel.
    for _ in range(DEPTH - 1):
        me = msg_e.astype(bf16)
        mo = msg_o.astype(bf16)
        a_msg = gather_sum(me, mo).astype(bf16)
        # message[b] = a_message[b2a[b]] - message[b2revb[b]]
        # (rev message is simply the other half of the pair -> no permutation matmul)
        pre_e = jnp.dot(b2ae, a_msg, preferred_element_type=f32) - msg_o
        pre_o = jnp.dot(b2ao, a_msg, preferred_element_type=f32) - msg_e
        # message = ReLU(input + W_h(message))     (W_h bias=False, dropout p=0)
        msg_e = jnp.maximum(
            inp_e + jnp.dot(pre_e.astype(bf16), wh, preferred_element_type=f32), 0.0)
        msg_o = jnp.maximum(
            inp_o + jnp.dot(pre_o.astype(bf16), wh, preferred_element_type=f32), 0.0)

    # Readout:
    #   a_message    = index_select_ND(message, a2b).sum(1)
    #   atom_hiddens = W_o(cat([f_atoms, a_message], 1))    (concat folded into split W_o)
    #   mol_vecs[i]  = atom_hiddens[scope_i].sum(0) / a_size  ->  SCOPE @ atom_hiddens
    a_msg = gather_sum(msg_e.astype(bf16), msg_o.astype(bf16))
    atom_h = (jnp.dot(fa_ref[...], woa_ref[...], preferred_element_type=f32)
              + jnp.dot(a_msg.astype(bf16), woh_ref[...], preferred_element_type=f32)
              + bo_ref[...])
    atom_ref[...] = atom_h
    mol_ref[...] = jnp.dot(scope_ref[...], atom_h, preferred_element_type=f32)


# -------------------------------- wrapper ------------------------------------

def mpn_forward(kparams, f_atoms_p, f_bonds_e, f_bonds_o,
                A2B_e, A2B_o, B2A_e, B2A_o, SCOPE, n_atoms, n_mols):
    NA_pad = f_atoms_p.shape[0]
    NM_pad = SCOPE.shape[0]
    mol_p, atom_p = pl.pallas_call(
        mpn_fused_kernel,
        out_shape=(jax.ShapeDtypeStruct((NM_pad, HIDDEN), jnp.float32),
                   jax.ShapeDtypeStruct((NA_pad, HIDDEN), jnp.float32)),
        in_specs=[_vmem()] * 13,
        out_specs=(_vmem(), _vmem()),
        compiler_params=pltpu.CompilerParams(vmem_limit_bytes=64 * 1024 * 1024),
    )(f_bonds_e, f_bonds_o, f_atoms_p,
      A2B_e, A2B_o, B2A_e, B2A_o, SCOPE,
      kparams["W_i"], kparams["W_h"], kparams["W_o_atom"], kparams["W_o_hidden"],
      kparams["b_o"])
    # MPN.forward (fp_method='molecular') returns (mol_vecs, [], []); atom_hiddens
    # is returned here as an auxiliary output for verification.
    return mol_p[:n_mols], atom_p[:n_atoms]


# ---------------------------- synthetic mol graph ----------------------------

def build_graph():
    # 3 small molecules (no chemprop index-0 padding row needed in this layout):
    #   mol0: 5-atom chain 0-1-2-3-4
    #   mol1: 4-atom ring  5-6-7-8-5
    #   mol2: 3-atom chain 9-10-11
    edges = [(0, 1), (1, 2), (2, 3), (3, 4),
             (5, 6), (6, 7), (7, 8), (8, 5),
             (9, 10), (10, 11)]
    n_atoms = 12
    a_scope = [(0, 5), (5, 4), (9, 3)]
    return n_atoms, edges, a_scope


def graph_arrays(n_atoms, edges):
    """Original chemprop-style index arrays (for the pure-JAX reference)."""
    E = len(edges)
    nb = 2 * E
    deg = np.zeros(n_atoms, np.int32)
    for u, v in edges:
        deg[u] += 1
        deg[v] += 1
    max_nb = int(deg.max())
    a2b = np.zeros((n_atoms, max_nb), np.int32)
    a2b_mask = np.zeros((n_atoms, max_nb), np.float32)
    cnt = np.zeros(n_atoms, np.int32)
    b2a = np.zeros(nb, np.int32)
    b2revb = np.zeros(nb, np.int32)
    for e, (u, v) in enumerate(edges):
        bf_, br_ = 2 * e, 2 * e + 1          # u->v, v->u
        b2a[bf_], b2a[br_] = u, v
        b2revb[bf_], b2revb[br_] = br_, bf_
        a2b[v, cnt[v]] = bf_; a2b_mask[v, cnt[v]] = 1.0; cnt[v] += 1
        a2b[u, cnt[u]] = br_; a2b_mask[u, cnt[u]] = 1.0; cnt[u] += 1
    return a2b, a2b_mask, b2a, b2revb


def dense_padded(n_atoms, edges, a_scope):
    """Dense, row-padded adjacency operands for the kernel (pair-split layout)."""
    E = len(edges)
    NA = _round_up(n_atoms, SUB)
    EP = _round_up(E, SUB)
    NM = _round_up(len(a_scope), SUB)
    A2B_e = np.zeros((NA, EP), np.float32)   # bond 2e   (u->v) enters v
    A2B_o = np.zeros((NA, EP), np.float32)   # bond 2e+1 (v->u) enters u
    B2A_e = np.zeros((EP, NA), np.float32)   # source atom of bond 2e
    B2A_o = np.zeros((EP, NA), np.float32)   # source atom of bond 2e+1
    for e, (u, v) in enumerate(edges):
        A2B_e[v, e] = 1.0
        A2B_o[u, e] = 1.0
        B2A_e[e, u] = 1.0
        B2A_o[e, v] = 1.0
    SCOPE = np.zeros((NM, NA), np.float32)
    for i, (st, sz) in enumerate(a_scope):
        SCOPE[i, st:st + sz] = 1.0 / sz      # aggregation='mean'
    return A2B_e, A2B_o, B2A_e, B2A_o, SCOPE, NA, EP, NM


# ---------------------------- pure-JAX reference -----------------------------

def reference(f_atoms, f_bonds, a2b, a2b_mask, b2a, b2revb, a_scope, params):
    """chemprop D-MPNN gather formulation; MXU operands rounded to bf16 exactly
    as in the kernel so the comparison is tight."""
    b = lambda x: x.astype(jnp.bfloat16).astype(jnp.float32)
    Wi, Wh = params["W_i"], params["W_h"]
    Woa, Woh, bo = params["W_o_atom"], params["W_o_hidden"], params["b_o"][0]

    inp = b(f_bonds) @ b(Wi)
    message = jnp.maximum(inp, 0.0)
    for _ in range(DEPTH - 1):
        mq = b(message)
        a_msg = (mq[a2b] * a2b_mask[..., None]).sum(axis=1)
        pre = b(a_msg)[b2a] - message[b2revb]
        message = jnp.maximum(inp + b(pre) @ b(Wh), 0.0)
    mq = b(message)
    a_msg = (mq[a2b] * a2b_mask[..., None]).sum(axis=1)
    atom_h = b(f_atoms) @ b(Woa) + b(a_msg) @ b(Woh) + bo
    mols = jnp.stack([atom_h[st:st + sz].sum(axis=0) * np.float32(1.0 / sz)
                      for st, sz in a_scope])
    return mols, atom_h


# ------------------------------------ main -----------------------------------

if __name__ == "__main__":
    key = jax.random.PRNGKey(0)
    n_atoms, edges, a_scope = build_graph()
    E = len(edges)
    nb = 2 * E
    n_mols = len(a_scope)

    a2b, a2b_mask, b2a, b2revb = graph_arrays(n_atoms, edges)
    A2B_e, A2B_o, B2A_e, B2A_o, SCOPE, NA, EP, NM = dense_padded(n_atoms, edges, a_scope)

    k_fa, k_fb, k_wi, k_wh, k_woa, k_woh, k_bo = jax.random.split(key, 7)
    f_atoms = jax.random.normal(k_fa, (n_atoms, ATOM_FDIM), jnp.float32)
    f_bonds = jax.random.normal(k_fb, (nb, BOND_FDIM), jnp.float32)

    params = {
        "W_i": 0.1 * jax.random.normal(k_wi, (BOND_FDIM, HIDDEN), jnp.float32),
        "W_h": 0.1 * jax.random.normal(k_wh, (HIDDEN, HIDDEN), jnp.float32),
        "W_o_atom": 0.1 * jax.random.normal(k_woa, (ATOM_FDIM, HIDDEN), jnp.float32),
        "W_o_hidden": 0.1 * jax.random.normal(k_woh, (HIDDEN, HIDDEN), jnp.float32),
        "b_o": 0.1 * jax.random.normal(k_bo, (1, HIDDEN), jnp.float32),
    }

    # ---- pack padded / bf16 kernel operands ---------------------------------
    def pad2(x, rows, cols):
        out = np.zeros((rows, cols), np.float32)
        x = np.asarray(x)
        out[:x.shape[0], :x.shape[1]] = x
        return out

    bf = jnp.bfloat16
    f_bonds_np = np.asarray(f_bonds)
    fbe = jnp.asarray(pad2(f_bonds_np[0::2], EP, FEAT_PAD), bf)   # even = forward bonds
    fbo = jnp.asarray(pad2(f_bonds_np[1::2], EP, FEAT_PAD), bf)   # odd  = reverse bonds
    fap = jnp.asarray(pad2(f_atoms, NA, FEAT_PAD), bf)

    kparams = {
        "W_i": jnp.asarray(pad2(params["W_i"], FEAT_PAD, HIDDEN), bf),
        "W_h": params["W_h"].astype(bf),
        "W_o_atom": jnp.asarray(pad2(params["W_o_atom"], FEAT_PAD, HIDDEN), bf),
        "W_o_hidden": params["W_o_hidden"].astype(bf),
        "b_o": params["b_o"],                         # bias / SCOPE stay f32
    }
    A2B_e_b = jnp.asarray(A2B_e, bf)
    A2B_o_b = jnp.asarray(A2B_o, bf)
    B2A_e_b = jnp.asarray(B2A_e, bf)
    B2A_o_b = jnp.asarray(B2A_o, bf)
    SCOPE_f = jnp.asarray(SCOPE, jnp.float32)

    mol_vecs, atom_hiddens = mpn_forward(
        kparams, fap, fbe, fbo, A2B_e_b, A2B_o_b, B2A_e_b, B2A_o_b, SCOPE_f,
        n_atoms, n_mols)
    jax.block_until_ready((mol_vecs, atom_hiddens))

    ref_mol, ref_atom = reference(
        f_atoms, f_bonds,
        jnp.asarray(a2b), jnp.asarray(a2b_mask),
        jnp.asarray(b2a), jnp.asarray(b2revb), a_scope, params)

    np.testing.assert_allclose(np.asarray(mol_vecs), np.asarray(ref_mol),
                               rtol=1e-4, atol=1e-4)
    np.testing.assert_allclose(np.asarray(atom_hiddens), np.asarray(ref_atom),
                               rtol=1e-4, atol=1e-4)

    assert mol_vecs.shape == (n_mols, HIDDEN)
    print("KERNEL_OK")
</pallas_src>

<mosaic_0001>
module attributes {stable_mosaic.version = 11 : i64} {
  func.func @mpn_fused_kernel(%arg0: memref<16x128xbf16, #tpu.memory_space<vmem>>, %arg1: memref<16x128xbf16, #tpu.memory_space<vmem>>, %arg2: memref<16x128xbf16, #tpu.memory_space<vmem>>, %arg3: memref<16x16xbf16, #tpu.memory_space<vmem>>, %arg4: memref<16x16xbf16, #tpu.memory_space<vmem>>, %arg5: memref<16x16xbf16, #tpu.memory_space<vmem>>, %arg6: memref<16x16xbf16, #tpu.memory_space<vmem>>, %arg7: memref<8x16xf32, #tpu.memory_space<vmem>>, %arg8: memref<128x128xbf16, #tpu.memory_space<vmem>>, %arg9: memref<128x128xbf16, #tpu.memory_space<vmem>>, %arg10: memref<128x128xbf16, #tpu.memory_space<vmem>>, %arg11: memref<128x128xbf16, #tpu.memory_space<vmem>>, %arg12: memref<1x128xf32, #tpu.memory_space<vmem>>, %arg13: memref<8x128xf32, #tpu.memory_space<vmem>>, %arg14: memref<16x128xf32, #tpu.memory_space<vmem>>) attributes {dimension_semantics = [], scalar_prefetch = 0 : i64, scratch_operands = 0 : i64, tpu.core_type = #tpu.core_type<tc>} {
    %c0 = arith.constant 0 : index
    %c0_0 = arith.constant 0 : index
    %0 = vector.load %arg8[%c0, %c0_0] : memref<128x128xbf16, #tpu.memory_space<vmem>>, vector<128x128xbf16>
    %c0_1 = arith.constant 0 : index
    %c0_2 = arith.constant 0 : index
    %1 = vector.load %arg9[%c0_1, %c0_2] : memref<128x128xbf16, #tpu.memory_space<vmem>>, vector<128x128xbf16>
    %c0_3 = arith.constant 0 : index
    %c0_4 = arith.constant 0 : index
    %2 = vector.load %arg3[%c0_3, %c0_4] : memref<16x16xbf16, #tpu.memory_space<vmem>>, vector<16x16xbf16>
    %c0_5 = arith.constant 0 : index
    %c0_6 = arith.constant 0 : index
    %3 = vector.load %arg4[%c0_5, %c0_6] : memref<16x16xbf16, #tpu.memory_space<vmem>>, vector<16x16xbf16>
    %c0_7 = arith.constant 0 : index
    %c0_8 = arith.constant 0 : index
    %4 = vector.load %arg5[%c0_7, %c0_8] : memref<16x16xbf16, #tpu.memory_space<vmem>>, vector<16x16xbf16>
    %c0_9 = arith.constant 0 : index
    %c0_10 = arith.constant 0 : index
    %5 = vector.load %arg6[%c0_9, %c0_10] : memref<16x16xbf16, #tpu.memory_space<vmem>>, vector<16x16xbf16>
    %c0_11 = arith.constant 0 : index
    %c0_12 = arith.constant 0 : index
    %6 = vector.load %arg0[%c0_11, %c0_12] : memref<16x128xbf16, #tpu.memory_space<vmem>>, vector<16x128xbf16>
    %cst = arith.constant dense<0.000000e+00> : vector<16x128xf32>
    %7 = tpu.matmul %6, %0, %cst {dimension_numbers = #tpu.dot_dimension_numbers<[1], [0], [0], [1], [0, 0, 1, 1], [], []>} : vector<16x128xbf16>, vector<128x128xbf16>, vector<16x128xf32> -> vector<16x128xf32>
    %c0_13 = arith.constant 0 : index
    %c0_14 = arith.constant 0 : index
    %8 = vector.load %arg1[%c0_13, %c0_14] : memref<16x128xbf16, #tpu.memory_space<vmem>>, vector<16x128xbf16>
    %cst_15 = arith.constant dense<0.000000e+00> : vector<16x128xf32>
    %9 = tpu.matmul %8, %0, %cst_15 {dimension_numbers = #tpu.dot_dimension_numbers<[1], [0], [0], [1], [0, 0, 1, 1], [], []>} : vector<16x128xbf16>, vector<128x128xbf16>, vector<16x128xf32> -> vector<16x128xf32>
    %cst_16 = arith.constant 0.000000e+00 : f32
    %10 = vector.broadcast %cst_16 : f32 to vector<16x128xf32>
    %11 = arith.maximumf %7, %10 : vector<16x128xf32>
    %cst_17 = arith.constant 0.000000e+00 : f32
    %12 = vector.broadcast %cst_17 : f32 to vector<16x128xf32>
    %13 = arith.maximumf %9, %12 : vector<16x128xf32>
    %14 = arith.truncf %11 : vector<16x128xf32> to vector<16x128xbf16>
    %15 = arith.truncf %13 : vector<16x128xf32> to vector<16x128xbf16>
    %cst_18 = arith.constant dense<0.000000e+00> : vector<16x128xf32>
    %16 = tpu.matmul %2, %14, %cst_18 {dimension_numbers = #tpu.dot_dimension_numbers<[1], [0], [0], [1], [0, 0, 1, 1], [], []>} : vector<16x16xbf16>, vector<16x128xbf16>, vector<16x128xf32> -> vector<16x128xf32>
    %cst_19 = arith.constant dense<0.000000e+00> : vector<16x128xf32>
    %17 = tpu.matmul %3, %15, %cst_19 {dimension_numbers = #tpu.dot_dimension_numbers<[1], [0], [0], [1], [0, 0, 1, 1], [], []>} : vector<16x16xbf16>, vector<16x128xbf16>, vector<16x128xf32> -> vector<16x128xf32>
    %18 = arith.addf %16, %17 : vector<16x128xf32>
    %19 = arith.truncf %18 : vector<16x128xf32> to vector<16x128xbf16>
    %cst_20 = arith.constant dense<0.000000e+00> : vector<16x128xf32>
    %20 = tpu.matmul %4, %19, %cst_20 {dimension_numbers = #tpu.dot_dimension_numbers<[1], [0], [0], [1], [0, 0, 1, 1], [], []>} : vector<16x16xbf16>, vector<16x128xbf16>, vector<16x128xf32> -> vector<16x128xf32>
    %21 = arith.subf %20, %13 : vector<16x128xf32>
    %cst_21 = arith.constant dense<0.000000e+00> : vector<16x128xf32>
    %22 = tpu.matmul %5, %19, %cst_21 {dimension_numbers = #tpu.dot_dimension_numbers<[1], [0], [0], [1], [0, 0, 1, 1], [], []>} : vector<16x16xbf16>, vector<16x128xbf16>, vector<16x128xf32> -> vector<16x128xf32>
    %23 = arith.subf %22, %11 : vector<16x128xf32>
    %24 = arith.truncf %21 : vector<16x128xf32> to vector<16x128xbf16>
    %cst_22 = arith.constant dense<0.000000e+00> : vector<16x128xf32>
    %25 = tpu.matmul %24, %1, %cst_22 {dimension_numbers = #tpu.dot_dimension_numbers<[1], [0], [0], [1], [0, 0, 1, 1], [], []>} : vector<16x128xbf16>, vector<128x128xbf16>, vector<16x128xf32> -> vector<16x128xf32>
    %26 = arith.addf %7, %25 : vector<16x128xf32>
    %cst_23 = arith.constant 0.000000e+00 : f32
    %27 = vector.broadcast %cst_23 : f32 to vector<16x128xf32>
    %28 = arith.maximumf %26, %27 : vector<16x128xf32>
    %29 = arith.truncf %23 : vector<16x128xf32> to vector<16x128xbf16>
    %cst_24 = arith.constant dense<0.000000e+00> : vector<16x128xf32>
    %30 = tpu.matmul %29, %1, %cst_24 {dimension_numbers = #tpu.dot_dimension_numbers<[1], [0], [0], [1], [0, 0, 1, 1], [], []>} : vector<16x128xbf16>, vector<128x128xbf16>, vector<16x128xf32> -> vector<16x128xf32>
    %31 = arith.addf %9, %30 : vector<16x128xf32>
    %cst_25 = arith.constant 0.000000e+00 : f32
    %32 = vector.broadcast %cst_25 : f32 to vector<16x128xf32>
    %33 = arith.maximumf %31, %32 : vector<16x128xf32>
    %34 = arith.truncf %28 : vector<16x128xf32> to vector<16x128xbf16>
    %35 = arith.truncf %33 : vector<16x128xf32> to vector<16x128xbf16>
    %cst_26 = arith.constant dense<0.000000e+00> : vector<16x128xf32>
    %36 = tpu.matmul %2, %34, %cst_26 {dimension_numbers = #tpu.dot_dimension_numbers<[1], [0], [0], [1], [0, 0, 1, 1], [], []>} : vector<16x16xbf16>, vector<16x128xbf16>, vector<16x128xf32> -> vector<16x128xf32>
    %cst_27 = arith.constant dense<0.000000e+00> : vector<16x128xf32>
    %37 = tpu.matmul %3, %35, %cst_27 {dimension_numbers = #tpu.dot_dimension_numbers<[1], [0], [0], [1], [0, 0, 1, 1], [], []>} : vector<16x16xbf16>, vector<16x128xbf16>, vector<16x128xf32> -> vector<16x128xf32>
    %38 = arith.addf %36, %37 : vector<16x128xf32>
    %39 = arith.truncf %38 : vector<16x128xf32> to vector<16x128xbf16>
    %cst_28 = arith.constant dense<0.000000e+00> : vector<16x128xf32>
    %40 = tpu.matmul %4, %39, %cst_28 {dimension_numbers = #tpu.dot_dimension_numbers<[1], [0], [0], [1], [0, 0, 1, 1], [], []>} : vector<16x16xbf16>, vector<16x128xbf16>, vector<16x128xf32> -> vector<16x128xf32>
    %41 = arith.subf %40, %33 : vector<16x128xf32>
    %cst_29 = arith.constant dense<0.000000e+00> : vector<16x128xf32>
    %42 = tpu.matmul %5, %39, %cst_29 {dimension_numbers = #tpu.dot_dimension_numbers<[1], [0], [0], [1], [0, 0, 1, 1], [], []>} : vector<16x16xbf16>, vector<16x128xbf16>, vector<16x128xf32> -> vector<16x128xf32>
    %43 = arith.subf %42, %28 : vector<16x128xf32>
    %44 = arith.truncf %41 : vector<16x128xf32> to vector<16x128xbf16>
    %cst_30 = arith.constant dense<0.000000e+00> : vector<16x128xf32>
    %45 = tpu.matmul %44, %1, %cst_30 {dimension_numbers = #tpu.dot_dimension_numbers<[1], [0], [0], [1], [0, 0, 1, 1], [], []>} : vector<16x128xbf16>, vector<128x128xbf16>, vector<16x128xf32> -> vector<16x128xf32>
    %46 = arith.addf %7, %45 : vector<16x128xf32>
    %cst_31 = arith.constant 0.000000e+00 : f32
    %47 = vector.broadcast %cst_31 : f32 to vector<16x128xf32>
    %48 = arith.maximumf %46, %47 : vector<16x128xf32>
    %49 = arith.truncf %43 : vector<16x128xf32> to vector<16x128xbf16>
    %cst_32 = arith.constant dense<0.000000e+00> : vector<16x128xf32>
    %50 = tpu.matmul %49, %1, %cst_32 {dimension_numbers = #tpu.dot_dimension_numbers<[1], [0], [0], [1], [0, 0, 1, 1], [], []>} : vector<16x128xbf16>, vector<128x128xbf16>, vector<16x128xf32> -> vector<16x128xf32>
    %51 = arith.addf %9, %50 : vector<16x128xf32>
    %cst_33 = arith.constant 0.000000e+00 : f32
    %52 = vector.broadcast %cst_33 : f32 to vector<16x128xf32>
    %53 = arith.maximumf %51, %52 : vector<16x128xf32>
    %54 = arith.truncf %48 : vector<16x128xf32> to vector<16x128xbf16>
    %55 = arith.truncf %53 : vector<16x128xf32> to vector<16x128xbf16>
    %cst_34 = arith.constant dense<0.000000e+00> : vector<16x128xf32>
    %56 = tpu.matmul %2, %54, %cst_34 {dimension_numbers = #tpu.dot_dimension_numbers<[1], [0], [0], [1], [0, 0, 1, 1], [], []>} : vector<16x16xbf16>, vector<16x128xbf16>, vector<16x128xf32> -> vector<16x128xf32>
    %cst_35 = arith.constant dense<0.000000e+00> : vector<16x128xf32>
    %57 = tpu.matmul %3, %55, %cst_35 {dimension_numbers = #tpu.dot_dimension_numbers<[1], [0], [0], [1], [0, 0, 1, 1], [], []>} : vector<16x16xbf16>, vector<16x128xbf16>, vector<16x128xf32> -> vector<16x128xf32>
    %58 = arith.addf %56, %57 : vector<16x128xf32>
    %c0_36 = arith.constant 0 : index
    %c0_37 = arith.constant 0 : index
    %59 = vector.load %arg2[%c0_36, %c0_37] : memref<16x128xbf16, #tpu.memory_space<vmem>>, vector<16x128xbf16>
    %c0_38 = arith.constant 0 : index
    %c0_39 = arith.constant 0 : index
    %60 = vector.load %arg10[%c0_38, %c0_39] : memref<128x128xbf16, #tpu.memory_space<vmem>>, vector<128x128xbf16>
    %cst_40 = arith.constant dense<0.000000e+00> : vector<16x128xf32>
    %61 = tpu.matmul %59, %60, %cst_40 {dimension_numbers = #tpu.dot_dimension_numbers<[1], [0], [0], [1], [0, 0, 1, 1], [], []>} : vector<16x128xbf16>, vector<128x128xbf16>, vector<16x128xf32> -> vector<16x128xf32>
    %62 = arith.truncf %58 : vector<16x128xf32> to vector<16x128xbf16>
    %c0_41 = arith.constant 0 : index
    %c0_42 = arith.constant 0 : index
    %63 = vector.load %arg11[%c0_41, %c0_42] : memref<128x128xbf16, #tpu.memory_space<vmem>>, vector<128x128xbf16>
    %cst_43 = arith.constant dense<0.000000e+00> : vector<16x128xf32>
    %64 = tpu.matmul %62, %63, %cst_43 {dimension_numbers = #tpu.dot_dimension_numbers<[1], [0], [0], [1], [0, 0, 1, 1], [], []>} : vector<16x128xbf16>, vector<128x128xbf16>, vector<16x128xf32> -> vector<16x128xf32>
    %65 = arith.addf %61, %64 : vector<16x128xf32>
    %c0_44 = arith.constant 0 : index
    %c0_45 = arith.constant 0 : index
    %66 = vector.load %arg12[%c0_44, %c0_45] : memref<1x128xf32, #tpu.memory_space<vmem>>, vector<1x128xf32>
    %67 = vector.broadcast %66 : vector<1x128xf32> to vector<16x128xf32>
    %68 = arith.addf %65, %67 : vector<16x128xf32>
    %c0_46 = arith.constant 0 : index
    %c0_47 = arith.constant 0 : index
    %69 = vector.load %arg14[%c0_46, %c0_47] : memref<16x128xf32, #tpu.memory_space<vmem>>, vector<16x128xf32>
    tpu.vector_store %arg14[%c0_46, %c0_47], %68 {strides = array<i32>} : memref<16x128xf32, #tpu.memory_space<vmem>>, vector<16x128xf32>,
    %c0_48 = arith.constant 0 : index
    %c0_49 = arith.constant 0 : index
    %70 = vector.load %arg7[%c0_48, %c0_49] : memref<8x16xf32, #tpu.memory_space<vmem>>, vector<8x16xf32>
    %cst_50 = arith.constant dense<0.000000e+00> : vector<8x128xf32>
    %71 = tpu.matmul %70, %68, %cst_50 {dimension_numbers = #tpu.dot_dimension_numbers<[1], [0], [0], [1], [0, 0, 1, 1], [], []>} : vector<8x16xf32>, vector<16x128xf32>, vector<8x128xf32> -> vector<8x128xf32>
    %c0_51 = arith.constant 0 : index
    %c0_52 = arith.constant 0 : index
    %72 = vector.load %arg13[%c0_51, %c0_52] : memref<8x128xf32, #tpu.memory_space<vmem>>, vector<8x128xf32>
    tpu.vector_store %arg13[%c0_51, %c0_52], %71 {strides = array<i32>} : memref<8x128xf32, #tpu.memory_space<vmem>>, vector<8x128xf32>,
    return
  }
}

</mosaic_0001>

<llo_original>
// kernel: tpu_custom_call.1
$region0: #{tpu_custom_call.1}
  #allocation0 [shape = 'u32[]', space=smem, size = 0x4, offset = 0x4, fixed_abs, tag = 'smem constant byte address 0x4 - core index']
  #allocation1 [shape = 'u32[144,128]{1,0:T(1,128)}', space=vmem, size = 0x12000, scoped, tag = 'internal scratch']
  %s0 = inlined_call_operand.hbm [shape: bf16[16,128], index: 0, kind: input, shape index: {}]
  %s1 = inlined_call_operand.hbm [shape: bf16[16,128], index: 1, kind: input, shape index: {}]
  %s2 = inlined_call_operand.hbm [shape: bf16[16,128], index: 2, kind: input, shape index: {}]
  %s3 = inlined_call_operand.hbm [shape: bf16[16,16], index: 3, kind: input, shape index: {}]
  %s4 = inlined_call_operand.hbm [shape: bf16[16,16], index: 4, kind: input, shape index: {}]
  %s5 = inlined_call_operand.vmem [shape: bf16[16,16], index: 5, kind: input, shape index: {}]
  %s6 = inlined_call_operand.hbm [shape: bf16[16,16], index: 6, kind: input, shape index: {}]
  %s7 = inlined_call_operand.hbm [shape: f32[8,16], index: 7, kind: input, shape index: {}]
  %s8 = inlined_call_operand.hbm [shape: bf16[128,128], index: 8, kind: input, shape index: {}]
  %s9 = inlined_call_operand.hbm [shape: bf16[128,128], index: 9, kind: input, shape index: {}]
  %s10 = inlined_call_operand.hbm [shape: bf16[128,128], index: 10, kind: input, shape index: {}]
  %s11 = inlined_call_operand.hbm [shape: bf16[128,128], index: 11, kind: input, shape index: {}]
  %s12 = inlined_call_operand.vmem [shape: f32[1,128], index: 12, kind: input, shape index: {}]
  %s13 = inlined_call_operand.hbm [shape: f32[8,128], index: 13, kind: output, shape index: {0}]
  %s14 = inlined_call_operand.hbm [shape: f32[16,128], index: 14, kind: output, shape index: {1}]
  %15 = xla_tuple %s13, %s14
  %s16 = sld [smem:[#allocation0]]
  $region114: #{tpu_custom_call.1} parent=0
    _
  %s18 = ssub.s32 1, %s16
  %s19 = scalar_select 0, %s18, %s16
  $region1: #{tpu_custom_call.1} parent=0
    #allocation2 [shape = 'u8[4096]{0}', space=vmem, size = 0x1000, scoped, tag = 'input window, operand 0, single buffered']
    #allocation3 [shape = 's32[1]{0}', space=sflag, size = 0x4, scoped, tag = 'scoped memory for tpu_custom_call.1']
    #allocation4 [shape = 's32[1]{0}', space=sflag, size = 0x4, scoped, tag = 'scoped memory for tpu_custom_call.1']
    #allocation5 [shape = 'u8[4096]{0}', space=vmem, size = 0x1000, scoped, tag = 'input window, operand 1, single buffered']
    #allocation6 [shape = 's32[1]{0}', space=sflag, size = 0x4, scoped, tag = 'scoped memory for tpu_custom_call.1']
    #allocation7 [shape = 'u8[4096]{0}', space=vmem, size = 0x1000, scoped, tag = 'input window, operand 2, single buffered']
    #allocation8 [shape = 'u8[4096]{0}', space=vmem, size = 0x1000, scoped, tag = 'input window, operand 3, single buffered']
    #allocation9 [shape = 's32[1]{0}', space=sflag, size = 0x4, scoped, tag = 'scoped memory for tpu_custom_call.1']
    #allocation10 [shape = 'u8[4096]{0}', space=vmem, size = 0x1000, scoped, tag = 'input window, operand 4, single buffered']
    #allocation11 [shape = 'u8[4096]{0}', space=vmem, size = 0x1000, scoped, tag = 'input window, operand 6, single buffered']
    #allocation12 [shape = 's32[1]{0}', space=sflag, size = 0x4, scoped, tag = 'scoped memory for tpu_custom_call.1']
    #allocation13 [shape = 'u8[4096]{0}', space=vmem, size = 0x1000, scoped, tag = 'input window, operand 7, single buffered']
    #allocation14 [shape = 'u8[32768]{0}', space=vmem, size = 0x8000, scoped, tag = 'input window, operand 8, single buffered']
    #allocation15 [shape = 's32[1]{0}', space=sflag, size = 0x4, scoped, tag = 'scoped memory for tpu_custom_call.1']
    #allocation16 [shape = 'u8[32768]{0}', space=vmem, size = 0x8000, scoped, tag = 'input window, operand 9, single buffered']
    #allocation17 [shape = 'u8[32768]{0}', space=vmem, size = 0x8000, scoped, tag = 'input window, operand 10, single buffered']
    #allocation18 [shape = 's32[1]{0}', space=sflag, size = 0x4, scoped, tag = 'scoped memory for tpu_custom_call.1']
    #allocation19 [shape = 'u8[32768]{0}', space=vmem, size = 0x8000, scoped, tag = 'input window, operand 11, single buffered']
    #allocation20 [shape = 'u8[4096]{0}', space=vmem, size = 0x1000, scoped, tag = 'output window, operand 0, single buffered']
    #allocation21 [shape = 'u8[8192]{0}', space=vmem, size = 0x2000, scoped, tag = 'output window, operand 1, single buffered']
    #allocation22 [shape = 's32[1]{0}', space=sflag, size = 0x4, scoped, tag = 'scoped memory for tpu_custom_call.1']
    %20 = vsyncpa [#allocation3], 0
    %21 = vsyncpa [#allocation6], 0
    %22 = vsyncpa [#allocation9], 0
    %23 = vsyncpa [#allocation12], 0
    %24 = vsyncpa [#allocation15], 0
    %25 = vsyncpa [#allocation18], 0
    %26 = vsyncpa [#allocation4], 0
    %27 = vsyncpa [#allocation22], 0
    // Predicated region
    $region2: #{tpu_custom_call.1} parent=1 // pred_check
      _
    $region3: #{tpu_custom_call.1} parent=1 // pred_check_branch
      %29 = sbr.rel (0) target = $region5
    $region4: #{tpu_custom_call.1} parent=1 // pred_region
      %s31 = ssub.s32 128, 128
      %32 = vsyncadd [#allocation3], %s31
      %s33 = sshll.u32 [#allocation2], 4
      %s34 = int_to_ptr.vmem [resolvable:$true] %s33
      %39 = dma.hbm_to_vmem [thread:$0]  %s0, 128, %s34, [#allocation3], 64, 64, 4
    $region5: #{tpu_custom_call.1} parent=1 // pred_fallthru
      _
    // Predicated region
    $region6: #{tpu_custom_call.1} parent=1 // pred_check
      _
    $region7: #{tpu_custom_call.1} parent=1 // pred_check_branch
      %41 = sbr.rel (0) target = $region9
    $region8: #{tpu_custom_call.1} parent=1 // pred_region
      %s43 = ssub.s32 128, 128
      %44 = vsyncadd [#allocation6], %s43
      %s45 = sshll.u32 [#allocation5], 4
      %s46 = int_to_ptr.vmem [resolvable:$true] %s45
      %51 = dma.hbm_to_vmem [thread:$0]  %s1, 128, %s46, [#allocation6], 64, 64, 4
    $region9: #{tpu_custom_call.1} parent=1 // pred_fallthru
      _
    // Predicated region
    $region10: #{tpu_custom_call.1} parent=1 // pred_check
      _
    $region11: #{tpu_custom_call.1} parent=1 // pred_check_branch
      %53 = sbr.rel (0) target = $region13
    $region12: #{tpu_custom_call.1} parent=1 // pred_region
      %s55 = ssub.s32 128, 128
      %56 = vsyncadd [#allocation6], %s55
      %s57 = sshll.u32 [#allocation7], 4
      %s58 = int_to_ptr.vmem [resolvable:$true] %s57
      %63 = dma.hbm_to_vmem [thread:$0]  %s2, 128, %s58, [#allocation6], 64, 64, 4
    $region13: #{tpu_custom_call.1} parent=1 // pred_fallthru
      _
    // Predicated region
    $region14: #{tpu_custom_call.1} parent=1 // pred_check
      _
    $region15: #{tpu_custom_call.1} parent=1 // pred_check_branch
      %65 = sbr.rel (0) target = $region17
    $region16: #{tpu_custom_call.1} parent=1 // pred_region
      %s67 = ssub.s32 128, 128
      %68 = vsyncadd [#allocation9], %s67
      %s69 = sshll.u32 [#allocation8], 4
      %s70 = int_to_ptr.vmem [resolvable:$true] %s69
      %75 = dma.hbm_to_vmem [thread:$0]  %s3, 128, %s70, [#allocation9], 64, 64, 4
    $region17: #{tpu_custom_call.1} parent=1 // pred_fallthru
      _
    // Predicated region
    $region18: #{tpu_custom_call.1} parent=1 // pred_check
      _
    $region19: #{tpu_custom_call.1} parent=1 // pred_check_branch
      %77 = sbr.rel (0) target = $region21
    $region20: #{tpu_custom_call.1} parent=1 // pred_region
      %s79 = ssub.s32 128, 128
      %80 = vsyncadd [#allocation9], %s79
      %s81 = sshll.u32 [#allocation10], 4
      %s82 = int_to_ptr.vmem [resolvable:$true] %s81
      %87 = dma.hbm_to_vmem [thread:$0]  %s4, 128, %s82, [#allocation9], 64, 64, 4
    $region21: #{tpu_custom_call.1} parent=1 // pred_fallthru
      _
    // Predicated region
    $region22: #{tpu_custom_call.1} parent=1 // pred_check
      _
    $region23: #{tpu_custom_call.1} parent=1 // pred_check_branch
      %89 = sbr.rel (0) target = $region25
    $region24: #{tpu_custom_call.1} parent=1 // pred_region
      _
    $region25: #{tpu_custom_call.1} parent=1 // pred_fallthru
      _
    // Predicated region
    $region26: #{tpu_custom_call.1} parent=1 // pred_check
      _
    $region27: #{tpu_custom_call.1} parent=1 // pred_check_branch
      %91 = sbr.rel (0) target = $region29
    $region28: #{tpu_custom_call.1} parent=1 // pred_region
      %s93 = ssub.s32 128, 128
      %94 = vsyncadd [#allocation12], %s93
      %s95 = sshll.u32 [#allocation11], 4
      %s96 = int_to_ptr.vmem [resolvable:$true] %s95
      %101 = dma.hbm_to_vmem [thread:$0]  %s6, 128, %s96, [#allocation12], 64, 64, 4
    $region29: #{tpu_custom_call.1} parent=1 // pred_fallthru
      _
    // Predicated region
    $region30: #{tpu_custom_call.1} parent=1 // pred_check
      _
    $region31: #{tpu_custom_call.1} parent=1 // pred_check_branch
      %103 = sbr.rel (0) target = $region33
    $region32: #{tpu_custom_call.1} parent=1 // pred_region
      %s105 = ssub.s32 128, 128
      %106 = vsyncadd [#allocation12], %s105
      %s108 = sshll.u32 [#allocation13], 4
      %s109 = int_to_ptr.vmem [resolvable:$true] %s108
      %111 = dma.hbm_to_vmem [thread:$0]  %s7, 128, %s109, [#allocation12]
    $region33: #{tpu_custom_call.1} parent=1 // pred_fallthru
      _
    // Predicated region
    $region34: #{tpu_custom_call.1} parent=1 // pred_check
      _
    $region35: #{tpu_custom_call.1} parent=1 // pred_check_branch
      %113 = sbr.rel (0) target = $region37
    $region36: #{tpu_custom_call.1} parent=1 // pred_region
      %s115 = ssub.s32 1024, 1024
      %116 = vsyncadd [#allocation15], %s115
      %s117 = sshll.u32 [#allocation14], 4
      %s118 = int_to_ptr.vmem [resolvable:$true] %s117
      %123 = dma.hbm_to_vmem [thread:$0]  %s8, 1024, %s118, [#allocation15], 64, 64, 4
    $region37: #{tpu_custom_call.1} parent=1 // pred_fallthru
      _
    // Predicated region
    $region38: #{tpu_custom_call.1} parent=1 // pred_check
      _
    $region39: #{tpu_custom_call.1} parent=1 // pred_check_branch
      %125 = sbr.rel (0) target = $region41
    $region40: #{tpu_custom_call.1} parent=1 // pred_region
      %s127 = ssub.s32 1024, 1024
      %128 = vsyncadd [#allocation15], %s127
      %s129 = sshll.u32 [#allocation16], 4
      %s130 = int_to_ptr.vmem [resolvable:$true] %s129
      %135 = dma.hbm_to_vmem [thread:$0]  %s9, 1024, %s130, [#allocation15], 64, 64, 4
    $region41: #{tpu_custom_call.1} parent=1 // pred_fallthru
      _
    // Predicated region
    $region42: #{tpu_custom_call.1} parent=1 // pred_check
      _
    $region43: #{tpu_custom_call.1} parent=1 // pred_check_branch
      %137 = sbr.rel (0) target = $region45
    $region44: #{tpu_custom_call.1} parent=1 // pred_region
      %s139 = ssub.s32 1024, 1024
      %140 = vsyncadd [#allocation18], %s139
      %s141 = sshll.u32 [#allocation17], 4
      %s142 = int_to_ptr.vmem [resolvable:$true] %s141
      %147 = dma.hbm_to_vmem [thread:$0]  %s10, 1024, %s142, [#allocation18], 64, 64, 4
    $region45: #{tpu_custom_call.1} parent=1 // pred_fallthru
      _
    // Predicated region
    $region46: #{tpu_custom_call.1} parent=1 // pred_check
      _
    $region47: #{tpu_custom_call.1} parent=1 // pred_check_branch
      %149 = sbr.rel (0) target = $region49
    $region48: #{tpu_custom_call.1} parent=1 // pred_region
      %s151 = ssub.s32 1024, 1024
      %152 = vsyncadd [#allocation18], %s151
      %s153 = sshll.u32 [#allocation19], 4
      %s154 = int_to_ptr.vmem [resolvable:$true] %s153
      %159 = dma.hbm_to_vmem [thread:$0]  %s11, 1024, %s154, [#allocation18], 64, 64, 4
    $region49: #{tpu_custom_call.1} parent=1 // pred_fallthru
      _
    // Predicated region
    $region50: #{tpu_custom_call.1} parent=1 // pred_check
      _
    $region51: #{tpu_custom_call.1} parent=1 // pred_check_branch
      %161 = sbr.rel (0) target = $region53
    $region52: #{tpu_custom_call.1} parent=1 // pred_region
      _
    $region53: #{tpu_custom_call.1} parent=1 // pred_fallthru
      _
    // Predicated region
    $region54: #{tpu_custom_call.1} parent=1 // pred_check
      _
    $region55: #{tpu_custom_call.1} parent=1 // pred_check_branch
      %163 = sbr.rel (0) target = $region57
    $region56: #{tpu_custom_call.1} parent=1 // pred_region
      %164 = dma.done [#allocation3], 128
    $region57: #{tpu_custom_call.1} parent=1 // pred_fallthru
      _
    // Predicated region
    $region58: #{tpu_custom_call.1} parent=1 // pred_check
      _
    $region59: #{tpu_custom_call.1} parent=1 // pred_check_branch
      %166 = sbr.rel (0) target = $region61
    $region60: #{tpu_custom_call.1} parent=1 // pred_region
      %167 = dma.done [#allocation6], 128
    $region61: #{tpu_custom_call.1} parent=1 // pred_fallthru
      _
    // Predicated region
    $region62: #{tpu_custom_call.1} parent=1 // pred_check
      _
    $region63: #{tpu_custom_call.1} parent=1 // pred_check_branch
      %169 = sbr.rel (0) target = $region65
    $region64: #{tpu_custom_call.1} parent=1 // pred_region
      %170 = dma.done [#allocation6], 128
    $region65: #{tpu_custom_call.1} parent=1 // pred_fallthru
      _
    // Predicated region
    $region66: #{tpu_custom_call.1} parent=1 // pred_check
      _
    $region67: #{tpu_custom_call.1} parent=1 // pred_check_branch
      %172 = sbr.rel (0) target = $region69
    $region68: #{tpu_custom_call.1} parent=1 // pred_region
      %173 = dma.done [#allocation9], 128
    $region69: #{tpu_custom_call.1} parent=1 // pred_fallthru
      _
    // Predicated region
    $region70: #{tpu_custom_call.1} parent=1 // pred_check
      _
    $region71: #{tpu_custom_call.1} parent=1 // pred_check_branch
      %175 = sbr.rel (0) target = $region73
    $region72: #{tpu_custom_call.1} parent=1 // pred_region
      %176 = dma.done [#allocation9], 128
    $region73: #{tpu_custom_call.1} parent=1 // pred_fallthru
      _
    // Predicated region
    $region74: #{tpu_custom_call.1} parent=1 // pred_check
      _
    $region75: #{tpu_custom_call.1} parent=1 // pred_check_branch
      %178 = sbr.rel (0) target = $region77
    $region76: #{tpu_custom_call.1} parent=1 // pred_region
      %179 = dma.done [#allocation12], 128
    $region77: #{tpu_custom_call.1} parent=1 // pred_fallthru
      _
    // Predicated region
    $region78: #{tpu_custom_call.1} parent=1 // pred_check
      _
    $region79: #{tpu_custom_call.1} parent=1 // pred_check_branch
      %181 = sbr.rel (0) target = $region81
    $region80: #{tpu_custom_call.1} parent=1 // pred_region
      %182 = dma.done [#allocation12], 128
    $region81: #{tpu_custom_call.1} parent=1 // pred_fallthru
      _
    // Predicated region
    $region82: #{tpu_custom_call.1} parent=1 // pred_check
      _
    $region83: #{tpu_custom_call.1} parent=1 // pred_check_branch
      %184 = sbr.rel (0) target = $region85
    $region84: #{tpu_custom_call.1} parent=1 // pred_region
      %185 = dma.done [#allocation15], 1024
    $region85: #{tpu_custom_call.1} parent=1 // pred_fallthru
      _
    // Predicated region
    $region86: #{tpu_custom_call.1} parent=1 // pred_check
      _
    $region87: #{tpu_custom_call.1} parent=1 // pred_check_branch
      %187 = sbr.rel (0) target = $region89
    $region88: #{tpu_custom_call.1} parent=1 // pred_region
      %188 = dma.done [#allocation15], 1024
    $region89: #{tpu_custom_call.1} parent=1 // pred_fallthru
      _
    // Predicated region
    $region90: #{tpu_custom_call.1} parent=1 // pred_check
      _
    $region91: #{tpu_custom_call.1} parent=1 // pred_check_branch
      %190 = sbr.rel (0) target = $region93
    $region92: #{tpu_custom_call.1} parent=1 // pred_region
      %191 = dma.done [#allocation18], 1024
    $region93: #{tpu_custom_call.1} parent=1 // pred_fallthru
      _
    // Predicated region
    $region94: #{tpu_custom_call.1} parent=1 // pred_check
      _
    $region95: #{tpu_custom_call.1} parent=1 // pred_check_branch
      %193 = sbr.rel (0) target = $region97
    $region96: #{tpu_custom_call.1} parent=1 // pred_region
      %194 = dma.done [#allocation18], 1024
    $region97: #{tpu_custom_call.1} parent=1 // pred_fallthru
      _
    %v196 = vld [vmem:[#allocation14] sm:$0xf]
    %v197 = vld [vmem:[#allocation14 + $0x4] sm:$0xf]
    %v198 = vld [vmem:[#allocation14 + $0x8] sm:$0xf]
    %v199 = vld [vmem:[#allocation14 + $0xc] sm:$0xf]
    %v200 = vld [vmem:[#allocation14 + $0x10] sm:$0xf]
    %v201 = vld [vmem:[#allocation14 + $0x14] sm:$0xf]
    %v202 = vld [vmem:[#allocation14 + $0x18] sm:$0xf]
    %v203 = vld [vmem:[#allocation14 + $0x1c] sm:$0xf]
    %v204 = vld [vmem:[#allocation14 + $0x20] sm:$0xf]
    %v205 = vld [vmem:[#allocation14 + $0x24] sm:$0xf]
    %v206 = vld [vmem:[#allocation14 + $0x28] sm:$0xf]
    %v207 = vld [vmem:[#allocation14 + $0x2c] sm:$0xf]
    %v208 = vld [vmem:[#allocation14 + $0x30] sm:$0xf]
    %v209 = vld [vmem:[#allocation14 + $0x34] sm:$0xf]
    %v210 = vld [vmem:[#allocation14 + $0x38] sm:$0xf]
    %v211 = vld [vmem:[#allocation14 + $0x3c] sm:$0xf]
    %v212 = vld [vmem:[#allocation16] sm:$0xf]
    %v213 = vld [vmem:[#allocation16 + $0x4] sm:$0xf]
    %v214 = vld [vmem:[#allocation16 + $0x8] sm:$0xf]
    %v215 = vld [vmem:[#allocation16 + $0xc] sm:$0xf]
    %v216 = vld [vmem:[#allocation16 + $0x10] sm:$0xf]
    %v217 = vld [vmem:[#allocation16 + $0x14] sm:$0xf]
    %v218 = vld [vmem:[#allocation16 + $0x18] sm:$0xf]
    %v219 = vld [vmem:[#allocation16 + $0x1c] sm:$0xf]
    %v220 = vld [vmem:[#allocation16 + $0x20] sm:$0xf]
    %v221 = vld [vmem:[#allocation16 + $0x24] sm:$0xf]
    %v222 = vld [vmem:[#allocation16 + $0x28] sm:$0xf]
    %v223 = vld [vmem:[#allocation16 + $0x2c] sm:$0xf]
    %v224 = vld [vmem:[#allocation16 + $0x30] sm:$0xf]
    %v225 = vld [vmem:[#allocation16 + $0x34] sm:$0xf]
    %v226 = vld [vmem:[#allocation16 + $0x38] sm:$0xf]
    %v227 = vld [vmem:[#allocation16 + $0x3c] sm:$0xf]
    %v228 = vld [vmem:[#allocation8] sm:$0xf]
    %v229 = vld [vmem:[#allocation8 + $0x4] sm:$0xf]
    %v230 = vld [vmem:[#allocation10] sm:$0xf]
    %v231 = vld [vmem:[#allocation10 + $0x4] sm:$0xf]
    %v232 = vld [vmem:[%s5] sm:$0xf]
    %v233 = vld [vmem:[%s5 + $0x4] sm:$0xf]
    %v234 = vld [vmem:[#allocation11] sm:$0xf]
    %v235 = vld [vmem:[#allocation11 + $0x4] sm:$0xf]
    %v236 = vld [vmem:[#allocation2] sm:$0xf]
    %v237 = vld [vmem:[#allocation2 + $0x4] sm:$0xf]
    %v240 = vunpack.c.l.b16 %v236
    %v241 = vunpack.c.l.b16 %v237
    %v242 = vpack.c.b16 %v241, %v240
    %v260 = vunpack.c.l.b16 %v196
    %v261 = vunpack.c.l.b16 %v197
    %v262 = vunpack.c.l.b16 %v198
    %v263 = vunpack.c.l.b16 %v199
    %v264 = vunpack.c.l.b16 %v200
    %v265 = vunpack.c.l.b16 %v201
    %v266 = vunpack.c.l.b16 %v202
    %v267 = vunpack.c.l.b16 %v203
    %v268 = vunpack.c.l.b16 %v204
    %v269 = vunpack.c.l.b16 %v205
    %v270 = vunpack.c.l.b16 %v206
    %v271 = vunpack.c.l.b16 %v207
    %v272 = vunpack.c.l.b16 %v208
    %v273 = vunpack.c.l.b16 %v209
    %v274 = vunpack.c.l.b16 %v210
    %v275 = vunpack.c.l.b16 %v211
    %v276 = vpack.c.b16 %v261, %v260
    %v277 = vpack.c.b16 %v263, %v262
    %v278 = vpack.c.b16 %v265, %v264
    %v279 = vpack.c.b16 %v267, %v266
    %v280 = vpack.c.b16 %v269, %v268
    %v281 = vpack.c.b16 %v271, %v270
    %v282 = vpack.c.b16 %v273, %v272
    %v283 = vpack.c.b16 %v275, %v274
    %292 = vmatprep.subr.bf16.mxu0 0
    %293 = vmatpush1.bf16.msra.mxu0 %v283
    %294 = vmatprep.subr.bf16.mxu0 0
    %295 = vmatpush1.bf16.msra.mxu0 %v282
    %296 = vmatprep.subr.bf16.mxu0 0
    %297 = vmatpush1.bf16.msra.mxu0 %v281
    %298 = vmatprep.subr.bf16.mxu0 0
    %299 = vmatpush1.bf16.msra.mxu0 %v280
    %300 = vmatprep.subr.bf16.mxu0 0
    %301 = vmatpush1.bf16.msra.mxu0 %v279
    %302 = vmatprep.subr.bf16.mxu0 0
    %303 = vmatpush1.bf16.msra.mxu0 %v278
    %304 = vmatprep.subr.bf16.mxu0 0
    %305 = vmatpush1.bf16.msra.mxu0 %v277
    %306 = vmatprep.subr.bf16.mxu0 0
    %307 = vmatpush1.bf16.msra.mxu0 %v276
    %308 = vmatprep.subr.bf16.mxu0 0
    %309 = vmatpush2.bf16.msra.mxu0 0
    %310 = vmatprep.subr.bf16.mxu0 0
    %311 = vmatpush2.bf16.msra.mxu0 0
    %312 = vmatprep.subr.bf16.mxu0 0
    %313 = vmatpush2.bf16.msra.mxu0 0
    %314 = vmatprep.subr.bf16.mxu0 0
    %315 = vmatpush2.bf16.msra.mxu0 0
    %316 = vmatprep.subr.bf16.mxu0 0
    %317 = vmatpush2.bf16.msra.mxu0 0
    %318 = vmatprep.subr.bf16.mxu0 0
    %319 = vmatpush2.bf16.msra.mxu0 0
    %320 = vmatprep.subr.bf16.mxu0 0
    %321 = vmatpush2.bf16.msra.mxu0 0
    %322 = vmatprep.subr.bf16.mxu0 0
    %323 = vmatpush2.bf16.msra.mxu0 0
    %324 = vmatprep.mubr.bf16.mxu0 0
    %325 = vmatmul.mubr.bf16.gmra.mxu0 %v242
    %v326 = vpop.f32.mrf.mxu0
    %v327 = vadd.f32 0.0, %v326
    %v328 = vpop.f32.mrf.mxu0
    %v329 = vpop.f32.mrf.mxu0
    %v330 = vadd.f32 0.0, %v329
    %v331 = vpop.f32.mrf.mxu0
    %332 = vdwg.mxu0
    %v333 = vld [vmem:[#allocation5] sm:$0xf]
    %v334 = vld [vmem:[#allocation5 + $0x4] sm:$0xf]
    %v337 = vunpack.c.l.b16 %v333
    %v338 = vunpack.c.l.b16 %v334
    %v339 = vpack.c.b16 %v338, %v337
    %341 = vmatprep.subr.bf16.mxu0 0
    %342 = vmatpush1.bf16.msra.mxu0 %v283
    %343 = vmatprep.subr.bf16.mxu0 0
    %344 = vmatpush1.bf16.msra.mxu0 %v282
    %345 = vmatprep.subr.bf16.mxu0 0
    %346 = vmatpush1.bf16.msra.mxu0 %v281
    %347 = vmatprep.subr.bf16.mxu0 0
    %348 = vmatpush1.bf16.msra.mxu0 %v280
    %349 = vmatprep.subr.bf16.mxu0 0
    %350 = vmatpush1.bf16.msra.mxu0 %v279
    %351 = vmatprep.subr.bf16.mxu0 0
    %352 = vmatpush1.bf16.msra.mxu0 %v278
    %353 = vmatprep.subr.bf16.mxu0 0
    %354 = vmatpush1.bf16.msra.mxu0 %v277
    %355 = vmatprep.subr.bf16.mxu0 0
    %356 = vmatpush1.bf16.msra.mxu0 %v276
    %357 = vmatprep.subr.bf16.mxu0 0
    %358 = vmatpush2.bf16.msra.mxu0 0
    %359 = vmatprep.subr.bf16.mxu0 0
    %360 = vmatpush2.bf16.msra.mxu0 0
    %361 = vmatprep.subr.bf16.mxu0 0
    %362 = vmatpush2.bf16.msra.mxu0 0
    %363 = vmatprep.subr.bf16.mxu0 0
    %364 = vmatpush2.bf16.msra.mxu0 0
    %365 = vmatprep.subr.bf16.mxu0 0
    %366 = vmatpush2.bf16.msra.mxu0 0
    %367 = vmatprep.subr.bf16.mxu0 0
    %368 = vmatpush2.bf16.msra.mxu0 0
    %369 = vmatprep.subr.bf16.mxu0 0
    %370 = vmatpush2.bf16.msra.mxu0 0
    %371 = vmatprep.subr.bf16.mxu0 0
    %372 = vmatpush2.bf16.msra.mxu0 0
    %373 = vmatprep.mubr.bf16.mxu0 0
    %374 = vmatmul.mubr.bf16.gmra.mxu0 %v339
    %v375 = vpop.f32.mrf.mxu0
    %v376 = vadd.f32 0.0, %v375
    %v377 = vpop.f32.mrf.mxu0
    %v378 = vpop.f32.mrf.mxu0
    %v379 = vadd.f32 0.0, %v378
    %v380 = vpop.f32.mrf.mxu0
    %381 = vdwg.mxu0
    %v382 = vmax.f32 %v327, 0.0
    %v383 = vmax.f32 %v330, 0.0
    %v384 = vmax.f32 %v376, 0.0
    %v385 = vmax.f32 %v379, 0.0
    %v386 = vpack.c.bf16 %v383, %v382
    %v387 = vpack.c.bf16 %v385, %v384
    %v390 = vunpack.c.l.b16 %v230
    %v391 = vunpack.c.l.b16 %v231
    %v392 = vpack.c.b16 %v391, %v390
    %vm393 = vcmask 130048
    %v395 = vsel %vm393, %v392, 0
    %397 = vmatprep.subr.bf16.mxu0 0
    %398 = vmatpush1.bf16.msra.mxu0 0
    %399 = vmatprep.subr.bf16.mxu0 0
    %400 = vmatpush1.bf16.msra.mxu0 0
    %401 = vmatprep.subr.bf16.mxu0 0
    %402 = vmatpush1.bf16.msra.mxu0 0
    %403 = vmatprep.subr.bf16.mxu0 0
    %404 = vmatpush1.bf16.msra.mxu0 0
    %405 = vmatprep.subr.bf16.mxu0 0
    %406 = vmatpush1.bf16.msra.mxu0 0
    %407 = vmatprep.subr.bf16.mxu0 0
    %408 = vmatpush1.bf16.msra.mxu0 0
    %409 = vmatprep.subr.bf16.mxu0 0
    %410 = vmatpush1.bf16.msra.mxu0 0
    %411 = vmatprep.subr.bf16.mxu0 0
    %412 = vmatpush1.bf16.msra.mxu0 %v387
    %413 = vmatprep.subr.bf16.mxu0 0
    %414 = vmatpush2.bf16.msra.mxu0 0
    %415 = vmatprep.subr.bf16.mxu0 0
    %416 = vmatpush2.bf16.msra.mxu0 0
    %417 = vmatprep.subr.bf16.mxu0 0
    %418 = vmatpush2.bf16.msra.mxu0 0
    %419 = vmatprep.subr.bf16.mxu0 0
    %420 = vmatpush2.bf16.msra.mxu0 0
    %421 = vmatprep.subr.bf16.mxu0 0
    %422 = vmatpush2.bf16.msra.mxu0 0
    %423 = vmatprep.subr.bf16.mxu0 0
    %424 = vmatpush2.bf16.msra.mxu0 0
    %425 = vmatprep.subr.bf16.mxu0 0
    %426 = vmatpush2.bf16.msra.mxu0 0
    %427 = vmatprep.subr.bf16.mxu0 0
    %428 = vmatpush2.bf16.msra.mxu0 0
    %429 = vmatprep.mubr.bf16.mxu0 0
    %430 = vmatmul.mubr.bf16.gmra.mxu0 %v395
    %v431 = vpop.f32.mrf.mxu0
    %v432 = vadd.f32 0.0, %v431
    %v433 = vpop.f32.mrf.mxu0
    %v434 = vpop.f32.mrf.mxu0
    %v435 = vadd.f32 0.0, %v434
    %v436 = vpop.f32.mrf.mxu0
    %437 = vdwg.mxu0
    %v440 = vunpack.c.l.b16 %v228
    %v441 = vunpack.c.l.b16 %v229
    %v442 = vpack.c.b16 %v441, %v440
    %v444 = vsel %vm393, %v442, 0
    %446 = vmatprep.subr.bf16.mxu0 0
    %447 = vmatpush1.bf16.msra.mxu0 0
    %448 = vmatprep.subr.bf16.mxu0 0
    %449 = vmatpush1.bf16.msra.mxu0 0
    %450 = vmatprep.subr.bf16.mxu0 0
    %451 = vmatpush1.bf16.msra.mxu0 0
    %452 = vmatprep.subr.bf16.mxu0 0
    %453 = vmatpush1.bf16.msra.mxu0 0
    %454 = vmatprep.subr.bf16.mxu0 0
    %455 = vmatpush1.bf16.msra.mxu0 0
    %456 = vmatprep.subr.bf16.mxu0 0
    %457 = vmatpush1.bf16.msra.mxu0 0
    %458 = vmatprep.subr.bf16.mxu0 0
    %459 = vmatpush1.bf16.msra.mxu0 0
    %460 = vmatprep.subr.bf16.mxu0 0
    %461 = vmatpush1.bf16.msra.mxu0 %v386
    %462 = vmatprep.subr.bf16.mxu0 0
    %463 = vmatpush2.bf16.msra.mxu0 0
    %464 = vmatprep.subr.bf16.mxu0 0
    %465 = vmatpush2.bf16.msra.mxu0 0
    %466 = vmatprep.subr.bf16.mxu0 0
    %467 = vmatpush2.bf16.msra.mxu0 0
    %468 = vmatprep.subr.bf16.mxu0 0
    %469 = vmatpush2.bf16.msra.mxu0 0
    %470 = vmatprep.subr.bf16.mxu0 0
    %471 = vmatpush2.bf16.msra.mxu0 0
    %472 = vmatprep.subr.bf16.mxu0 0
    %473 = vmatpush2.bf16.msra.mxu0 0
    %474 = vmatprep.subr.bf16.mxu0 0
    %475 = vmatpush2.bf16.msra.mxu0 0
    %476 = vmatprep.subr.bf16.mxu0 0
    %477 = vmatpush2.bf16.msra.mxu0 0
    %478 = vmatprep.mubr.bf16.mxu0 0
    %479 = vmatmul.mubr.bf16.gmra.mxu0 %v444
    %v480 = vpop.f32.mrf.mxu0
    %v481 = vadd.f32 %v432, %v480
    %v482 = vpop.f32.mrf.mxu0
    %v483 = vpop.f32.mrf.mxu0
    %v484 = vadd.f32 %v435, %v483
    %v485 = vpop.f32.mrf.mxu0
    %486 = vdwg.mxu0
    %v487 = vpack.c.bf16 %v484, %v481
    %v490 = vunpack.c.l.b16 %v232
    %v491 = vunpack.c.l.b16 %v233
    %v492 = vpack.c.b16 %v491, %v490
    %v494 = vsel %vm393, %v492, 0
    %496 = vmatprep.subr.bf16.mxu0 0
    %497 = vmatpush1.bf16.msra.mxu0 0
    %498 = vmatprep.subr.bf16.mxu0 0
    %499 = vmatpush1.bf16.msra.mxu0 0
    %500 = vmatprep.subr.bf16.mxu0 0
    %501 = vmatpush1.bf16.msra.mxu0 0
    %502 = vmatprep.subr.bf16.mxu0 0
    %503 = vmatpush1.bf16.msra.mxu0 0
    %504 = vmatprep.subr.bf16.mxu0 0
    %505 = vmatpush1.bf16.msra.mxu0 0
    %506 = vmatprep.subr.bf16.mxu0 0
    %507 = vmatpush1.bf16.msra.mxu0 0
    %508 = vmatprep.subr.bf16.mxu0 0
    %509 = vmatpush1.bf16.msra.mxu0 0
    %510 = vmatprep.subr.bf16.mxu0 0
    %511 = vmatpush1.bf16.msra.mxu0 %v487
    %512 = vmatprep.subr.bf16.mxu0 0
    %513 = vmatpush2.bf16.msra.mxu0 0
    %514 = vmatprep.subr.bf16.mxu0 0
    %515 = vmatpush2.bf16.msra.mxu0 0
    %516 = vmatprep.subr.bf16.mxu0 0
    %517 = vmatpush2.bf16.msra.mxu0 0
    %518 = vmatprep.subr.bf16.mxu0 0
    %519 = vmatpush2.bf16.msra.mxu0 0
    %520 = vmatprep.subr.bf16.mxu0 0
    %521 = vmatpush2.bf16.msra.mxu0 0
    %522 = vmatprep.subr.bf16.mxu0 0
    %523 = vmatpush2.bf16.msra.mxu0 0
    %524 = vmatprep.subr.bf16.mxu0 0
    %525 = vmatpush2.bf16.msra.mxu0 0
    %526 = vmatprep.subr.bf16.mxu0 0
    %527 = vmatpush2.bf16.msra.mxu0 0
    %528 = vmatprep.mubr.bf16.mxu0 0
    %529 = vmatmul.mubr.bf16.gmra.mxu0 %v494
    %v530 = vpop.f32.mrf.mxu0
    %v531 = vadd.f32 0.0, %v530
    %v532 = vpop.f32.mrf.mxu0
    %v533 = vpop.f32.mrf.mxu0
    %v534 = vadd.f32 0.0, %v533
    %v535 = vpop.f32.mrf.mxu0
    %536 = vdwg.mxu0
    %v537 = vsub.f32 %v531, %v384
    %v538 = vsub.f32 %v534, %v385
    %v541 = vunpack.c.l.b16 %v234
    %v542 = vunpack.c.l.b16 %v235
    %v543 = vpack.c.b16 %v542, %v541
    %v545 = vsel %vm393, %v543, 0
    %547 = vmatprep.subr.bf16.mxu0 0
    %548 = vmatpush1.bf16.msra.mxu0 0
    %549 = vmatprep.subr.bf16.mxu0 0
    %550 = vmatpush1.bf16.msra.mxu0 0
    %551 = vmatprep.subr.bf16.mxu0 0
    %552 = vmatpush1.bf16.msra.mxu0 0
    %553 = vmatprep.subr.bf16.mxu0 0
    %554 = vmatpush1.bf16.msra.mxu0 0
    %555 = vmatprep.subr.bf16.mxu0 0
    %556 = vmatpush1.bf16.msra.mxu0 0
    %557 = vmatprep.subr.bf16.mxu0 0
    %558 = vmatpush1.bf16.msra.mxu0 0
    %559 = vmatprep.subr.bf16.mxu0 0
    %560 = vmatpush1.bf16.msra.mxu0 0
    %561 = vmatprep.subr.bf16.mxu0 0
    %562 = vmatpush1.bf16.msra.mxu0 %v487
    %563 = vmatprep.subr.bf16.mxu0 0
    %564 = vmatpush2.bf16.msra.mxu0 0
    %565 = vmatprep.subr.bf16.mxu0 0
    %566 = vmatpush2.bf16.msra.mxu0 0
    %567 = vmatprep.subr.bf16.mxu0 0
    %568 = vmatpush2.bf16.msra.mxu0 0
    %569 = vmatprep.subr.bf16.mxu0 0
    %570 = vmatpush2.bf16.msra.mxu0 0
    %571 = vmatprep.subr.bf16.mxu0 0
    %572 = vmatpush2.bf16.msra.mxu0 0
    %573 = vmatprep.subr.bf16.mxu0 0
    %574 = vmatpush2.bf16.msra.mxu0 0
    %575 = vmatprep.subr.bf16.mxu0 0
    %576 = vmatpush2.bf16.msra.mxu0 0
    %577 = vmatprep.subr.bf16.mxu0 0
    %578 = vmatpush2.bf16.msra.mxu0 0
    %579 = vmatprep.mubr.bf16.mxu0 0
    %580 = vmatmul.mubr.bf16.gmra.mxu0 %v545
    %v581 = vpop.f32.mrf.mxu0
    %v582 = vadd.f32 0.0, %v581
    %v583 = vpop.f32.mrf.mxu0
    %v584 = vpop.f32.mrf.mxu0
    %v585 = vadd.f32 0.0, %v584
    %v586 = vpop.f32.mrf.mxu0
    %587 = vdwg.mxu0
    %v588 = vsub.f32 %v582, %v382
    %v589 = vsub.f32 %v585, %v383
    %v590 = vpack.c.bf16 %v538, %v537
    %v607 = vunpack.c.l.b16 %v212
    %v608 = vunpack.c.l.b16 %v213
    %v609 = vunpack.c.l.b16 %v214
    %v610 = vunpack.c.l.b16 %v215
    %v611 = vunpack.c.l.b16 %v216
    %v612 = vunpack.c.l.b16 %v217
    %v613 = vunpack.c.l.b16 %v218
    %v614 = vunpack.c.l.b16 %v219
    %v615 = vunpack.c.l.b16 %v220
    %v616 = vunpack.c.l.b16 %v221
    %v617 = vunpack.c.l.b16 %v222
    %v618 = vunpack.c.l.b16 %v223
    %v619 = vunpack.c.l.b16 %v224
    %v620 = vunpack.c.l.b16 %v225
    %v621 = vunpack.c.l.b16 %v226
    %v622 = vunpack.c.l.b16 %v227
    %v623 = vpack.c.b16 %v608, %v607
    %v624 = vpack.c.b16 %v610, %v609
    %v625 = vpack.c.b16 %v612, %v611
    %v626 = vpack.c.b16 %v614, %v613
    %v627 = vpack.c.b16 %v616, %v615
    %v628 = vpack.c.b16 %v618, %v617
    %v629 = vpack.c.b16 %v620, %v619
    %v630 = vpack.c.b16 %v622, %v621
    %639 = vmatprep.subr.bf16.mxu0 0
    %640 = vmatpush1.bf16.msra.mxu0 %v630
    %641 = vmatprep.subr.bf16.mxu0 0
    %642 = vmatpush1.bf16.msra.mxu0 %v629
    %643 = vmatprep.subr.bf16.mxu0 0
    %644 = vmatpush1.bf16.msra.mxu0 %v628
    %645 = vmatprep.subr.bf16.mxu0 0
    %646 = vmatpush1.bf16.msra.mxu0 %v627
    %647 = vmatprep.subr.bf16.mxu0 0
    %648 = vmatpush1.bf16.msra.mxu0 %v626
    %649 = vmatprep.subr.bf16.mxu0 0
    %650 = vmatpush1.bf16.msra.mxu0 %v625
    %651 = vmatprep.subr.bf16.mxu0 0
    %652 = vmatpush1.bf16.msra.mxu0 %v624
    %653 = vmatprep.subr.bf16.mxu0 0
    %654 = vmatpush1.bf16.msra.mxu0 %v623
    %655 = vmatprep.subr.bf16.mxu0 0
    %656 = vmatpush2.bf16.msra.mxu0 0
    %657 = vmatprep.subr.bf16.mxu0 0
    %658 = vmatpush2.bf16.msra.mxu0 0
    %659 = vmatprep.subr.bf16.mxu0 0
    %660 = vmatpush2.bf16.msra.mxu0 0
    %661 = vmatprep.subr.bf16.mxu0 0
    %662 = vmatpush2.bf16.msra.mxu0 0
    %663 = vmatprep.subr.bf16.mxu0 0
    %664 = vmatpush2.bf16.msra.mxu0 0
    %665 = vmatprep.subr.bf16.mxu0 0
    %666 = vmatpush2.bf16.msra.mxu0 0
    %667 = vmatprep.subr.bf16.mxu0 0
    %668 = vmatpush2.bf16.msra.mxu0 0
    %669 = vmatprep.subr.bf16.mxu0 0
    %670 = vmatpush2.bf16.msra.mxu0 0
    %671 = vmatprep.mubr.bf16.mxu0 0
    %672 = vmatmul.mubr.bf16.gmra.mxu0 %v590
    %v673 = vpop.f32.mrf.mxu0
    %v674 = vadd.f32 0.0, %v673
    %v675 = vpop.f32.mrf.mxu0
    %v676 = vpop.f32.mrf.mxu0
    %v677 = vadd.f32 0.0, %v676
    %v678 = vpop.f32.mrf.mxu0
    %679 = vdwg.mxu0
    %v680 = vadd.f32 %v327, %v674
    %v681 = vadd.f32 %v330, %v677
    %v682 = vmax.f32 %v680, 0.0
    %v683 = vmax.f32 %v681, 0.0
    %v684 = vpack.c.bf16 %v589, %v588
    %685 = vmatprep.subr.bf16.mxu0 0
    %686 = vmatpush1.bf16.msra.mxu0 %v630
    %687 = vmatprep.subr.bf16.mxu0 0
    %688 = vmatpush1.bf16.msra.mxu0 %v629
    %689 = vmatprep.subr.bf16.mxu0 0
    %690 = vmatpush1.bf16.msra.mxu0 %v628
    %691 = vmatprep.subr.bf16.mxu0 0
    %692 = vmatpush1.bf16.msra.mxu0 %v627
    %693 = vmatprep.subr.bf16.mxu0 0
    %694 = vmatpush1.bf16.msra.mxu0 %v626
    %695 = vmatprep.subr.bf16.mxu0 0
    %696 = vmatpush1.bf16.msra.mxu0 %v625
    %697 = vmatprep.subr.bf16.mxu0 0
    %698 = vmatpush1.bf16.msra.mxu0 %v624
    %699 = vmatprep.subr.bf16.mxu0 0
    %700 = vmatpush1.bf16.msra.mxu0 %v623
    %701 = vmatprep.subr.bf16.mxu0 0
    %702 = vmatpush2.bf16.msra.mxu0 0
    %703 = vmatprep.subr.bf16.mxu0 0
    %704 = vmatpush2.bf16.msra.mxu0 0
    %705 = vmatprep.subr.bf16.mxu0 0
    %706 = vmatpush2.bf16.msra.mxu0 0
    %707 = vmatprep.subr.bf16.mxu0 0
    %708 = vmatpush2.bf16.msra.mxu0 0
    %709 = vmatprep.subr.bf16.mxu0 0
    %710 = vmatpush2.bf16.msra.mxu0 0
    %711 = vmatprep.subr.bf16.mxu0 0
    %712 = vmatpush2.bf16.msra.mxu0 0
    %713 = vmatprep.subr.bf16.mxu0 0
    %714 = vmatpush2.bf16.msra.mxu0 0
    %715 = vmatprep.subr.bf16.mxu0 0
    %716 = vmatpush2.bf16.msra.mxu0 0
    %717 = vmatprep.mubr.bf16.mxu0 0
    %718 = vmatmul.mubr.bf16.gmra.mxu0 %v684
    %v719 = vpop.f32.mrf.mxu0
    %v720 = vadd.f32 0.0, %v719
    %v721 = vpop.f32.mrf.mxu0
    %v722 = vpop.f32.mrf.mxu0
    %v723 = vadd.f32 0.0, %v722
    %v724 = vpop.f32.mrf.mxu0
    %725 = vdwg.mxu0
    %v726 = vadd.f32 %v376, %v720
    %v727 = vadd.f32 %v379, %v723
    %v728 = vmax.f32 %v726, 0.0
    %v729 = vmax.f32 %v727, 0.0
    %v730 = vpack.c.bf16 %v683, %v682
    %v731 = vpack.c.bf16 %v729, %v728
    %732 = vmatprep.subr.bf16.mxu0 0
    %733 = vmatpush1.bf16.msra.mxu0 0
    %734 = vmatprep.subr.bf16.mxu0 0
    %735 = vmatpush1.bf16.msra.mxu0 0
    %736 = vmatprep.subr.bf16.mxu0 0
    %737 = vmatpush1.bf16.msra.mxu0 0
    %738 = vmatprep.subr.bf16.mxu0 0
    %739 = vmatpush1.bf16.msra.mxu0 0
    %740 = vmatprep.subr.bf16.mxu0 0
    %741 = vmatpush1.bf16.msra.mxu0 0
    %742 = vmatprep.subr.bf16.mxu0 0
    %743 = vmatpush1.bf16.msra.mxu0 0
    %744 = vmatprep.subr.bf16.mxu0 0
    %745 = vmatpush1.bf16.msra.mxu0 0
    %746 = vmatprep.subr.bf16.mxu0 0
    %747 = vmatpush1.bf16.msra.mxu0 %v731
    %748 = vmatprep.subr.bf16.mxu0 0
    %749 = vmatpush2.bf16.msra.mxu0 0
    %750 = vmatprep.subr.bf16.mxu0 0
    %751 = vmatpush2.bf16.msra.mxu0 0
    %752 = vmatprep.subr.bf16.mxu0 0
    %753 = vmatpush2.bf16.msra.mxu0 0
    %754 = vmatprep.subr.bf16.mxu0 0
    %755 = vmatpush2.bf16.msra.mxu0 0
    %756 = vmatprep.subr.bf16.mxu0 0
    %757 = vmatpush2.bf16.msra.mxu0 0
    %758 = vmatprep.subr.bf16.mxu0 0
    %759 = vmatpush2.bf16.msra.mxu0 0
    %760 = vmatprep.subr.bf16.mxu0 0
    %761 = vmatpush2.bf16.msra.mxu0 0
    %762 = vmatprep.subr.bf16.mxu0 0
    %763 = vmatpush2.bf16.msra.mxu0 0
    %764 = vmatprep.mubr.bf16.mxu0 0
    %765 = vmatmul.mubr.bf16.gmra.mxu0 %v395
    %v766 = vpop.f32.mrf.mxu0
    %v767 = vadd.f32 0.0, %v766
    %v768 = vpop.f32.mrf.mxu0
    %v769 = vpop.f32.mrf.mxu0
    %v770 = vadd.f32 0.0, %v769
    %v771 = vpop.f32.mrf.mxu0
    %772 = vdwg.mxu0
    %773 = vmatprep.subr.bf16.mxu0 0
    %774 = vmatpush1.bf16.msra.mxu0 0
    %775 = vmatprep.subr.bf16.mxu0 0
    %776 = vmatpush1.bf16.msra.mxu0 0
    %777 = vmatprep.subr.bf16.mxu0 0
    %778 = vmatpush1.bf16.msra.mxu0 0
    %779 = vmatprep.subr.bf16.mxu0 0
    %780 = vmatpush1.bf16.msra.mxu0 0
    %781 = vmatprep.subr.bf16.mxu0 0
    %782 = vmatpush1.bf16.msra.mxu0 0
    %783 = vmatprep.subr.bf16.mxu0 0
    %784 = vmatpush1.bf16.msra.mxu0 0
    %785 = vmatprep.subr.bf16.mxu0 0
    %786 = vmatpush1.bf16.msra.mxu0 0
    %787 = vmatprep.subr.bf16.mxu0 0
    %788 = vmatpush1.bf16.msra.mxu0 %v730
    %789 = vmatprep.subr.bf16.mxu0 0
    %790 = vmatpush2.bf16.msra.mxu0 0
    %791 = vmatprep.subr.bf16.mxu0 0
    %792 = vmatpush2.bf16.msra.mxu0 0
    %793 = vmatprep.subr.bf16.mxu0 0
    %794 = vmatpush2.bf16.msra.mxu0 0
    %795 = vmatprep.subr.bf16.mxu0 0
    %796 = vmatpush2.bf16.msra.mxu0 0
    %797 = vmatprep.subr.bf16.mxu0 0
    %798 = vmatpush2.bf16.msra.mxu0 0
    %799 = vmatprep.subr.bf16.mxu0 0
    %800 = vmatpush2.bf16.msra.mxu0 0
    %801 = vmatprep.subr.bf16.mxu0 0
    %802 = vmatpush2.bf16.msra.mxu0 0
    %803 = vmatprep.subr.bf16.mxu0 0
    %804 = vmatpush2.bf16.msra.mxu0 0
    %805 = vmatprep.mubr.bf16.mxu0 0
    %806 = vmatmul.mubr.bf16.gmra.mxu0 %v444
    %v807 = vpop.f32.mrf.mxu0
    %v808 = vadd.f32 %v767, %v807
    %v809 = vpop.f32.mrf.mxu0
    %v810 = vpop.f32.mrf.mxu0
    %v811 = vadd.f32 %v770, %v810
    %v812 = vpop.f32.mrf.mxu0
    %813 = vdwg.mxu0
    %v814 = vpack.c.bf16 %v811, %v808
    %815 = vmatprep.subr.bf16.mxu0 0
    %816 = vmatpush1.bf16.msra.mxu0 0
    %817 = vmatprep.subr.bf16.mxu0 0
    %818 = vmatpush1.bf16.msra.mxu0 0
    %819 = vmatprep.subr.bf16.mxu0 0
    %820 = vmatpush1.bf16.msra.mxu0 0
    %821 = vmatprep.subr.bf16.mxu0 0
    %822 = vmatpush1.bf16.msra.mxu0 0
    %823 = vmatprep.subr.bf16.mxu0 0
    %824 = vmatpush1.bf16.msra.mxu0 0
    %825 = vmatprep.subr.bf16.mxu0 0
    %826 = vmatpush1.bf16.msra.mxu0 0
    %827 = vmatprep.subr.bf16.mxu0 0
    %828 = vmatpush1.bf16.msra.mxu0 0
    %829 = vmatprep.subr.bf16.mxu0 0
    %830 = vmatpush1.bf16.msra.mxu0 %v814
    %831 = vmatprep.subr.bf16.mxu0 0
    %832 = vmatpush2.bf16.msra.mxu0 0
    %833 = vmatprep.subr.bf16.mxu0 0
    %834 = vmatpush2.bf16.msra.mxu0 0
    %835 = vmatprep.subr.bf16.mxu0 0
    %836 = vmatpush2.bf16.msra.mxu0 0
    %837 = vmatprep.subr.bf16.mxu0 0
    %838 = vmatpush2.bf16.msra.mxu0 0
    %839 = vmatprep.subr.bf16.mxu0 0
    %840 = vmatpush2.bf16.msra.mxu0 0
    %841 = vmatprep.subr.bf16.mxu0 0
    %842 = vmatpush2.bf16.msra.mxu0 0
    %843 = vmatprep.subr.bf16.mxu0 0
    %844 = vmatpush2.bf16.msra.mxu0 0
    %845 = vmatprep.subr.bf16.mxu0 0
    %846 = vmatpush2.bf16.msra.mxu0 0
    %847 = vmatprep.mubr.bf16.mxu0 0
    %848 = vmatmul.mubr.bf16.gmra.mxu0 %v494
    %v849 = vpop.f32.mrf.mxu0
    %v850 = vadd.f32 0.0, %v849
    %v851 = vpop.f32.mrf.mxu0
    %v852 = vpop.f32.mrf.mxu0
    %v853 = vadd.f32 0.0, %v852
    %v854 = vpop.f32.mrf.mxu0
    %855 = vdwg.mxu0
    %v856 = vsub.f32 %v850, %v728
    %v857 = vsub.f32 %v853, %v729
    %858 = vmatprep.subr.bf16.mxu0 0
    %859 = vmatpush1.bf16.msra.mxu0 0
    %860 = vmatprep.subr.bf16.mxu0 0
    %861 = vmatpush1.bf16.msra.mxu0 0
    %862 = vmatprep.subr.bf16.mxu0 0
    %863 = vmatpush1.bf16.msra.mxu0 0
    %864 = vmatprep.subr.bf16.mxu0 0
    %865 = vmatpush1.bf16.msra.mxu0 0
    %866 = vmatprep.subr.bf16.mxu0 0
    %867 = vmatpush1.bf16.msra.mxu0 0
    %868 = vmatprep.subr.bf16.mxu0 0
    %869 = vmatpush1.bf16.msra.mxu0 0
    %870 = vmatprep.subr.bf16.mxu0 0
    %871 = vmatpush1.bf16.msra.mxu0 0
    %872 = vmatprep.subr.bf16.mxu0 0
    %873 = vmatpush1.bf16.msra.mxu0 %v814
    %874 = vmatprep.subr.bf16.mxu0 0
    %875 = vmatpush2.bf16.msra.mxu0 0
    %876 = vmatprep.subr.bf16.mxu0 0
    %877 = vmatpush2.bf16.msra.mxu0 0
    %878 = vmatprep.subr.bf16.mxu0 0
    %879 = vmatpush2.bf16.msra.mxu0 0
    %880 = vmatprep.subr.bf16.mxu0 0
    %881 = vmatpush2.bf16.msra.mxu0 0
    %882 = vmatprep.subr.bf16.mxu0 0
    %883 = vmatpush2.bf16.msra.mxu0 0
    %884 = vmatprep.subr.bf16.mxu0 0
    %885 = vmatpush2.bf16.msra.mxu0 0
    %886 = vmatprep.subr.bf16.mxu0 0
    %887 = vmatpush2.bf16.msra.mxu0 0
    %888 = vmatprep.subr.bf16.mxu0 0
    %889 = vmatpush2.bf16.msra.mxu0 0
    %890 = vmatprep.mubr.bf16.mxu0 0
    %891 = vmatmul.mubr.bf16.gmra.mxu0 %v545
    %v892 = vpop.f32.mrf.mxu0
    %v893 = vadd.f32 0.0, %v892
    %v894 = vpop.f32.mrf.mxu0
    %v895 = vpop.f32.mrf.mxu0
    %v896 = vadd.f32 0.0, %v895
    %v897 = vpop.f32.mrf.mxu0
    %898 = vdwg.mxu0
    %v899 = vsub.f32 %v893, %v682
    %v900 = vsub.f32 %v896, %v683
    %v901 = vpack.c.bf16 %v857, %v856
    %902 = vmatprep.subr.bf16.mxu0 0
    %903 = vmatpush1.bf16.msra.mxu0 %v630
    %904 = vmatprep.subr.bf16.mxu0 0
    %905 = vmatpush1.bf16.msra.mxu0 %v629
    %906 = vmatprep.subr.bf16.mxu0 0
    %907 = vmatpush1.bf16.msra.mxu0 %v628
    %908 = vmatprep.subr.bf16.mxu0 0
    %909 = vmatpush1.bf16.msra.mxu0 %v627
    %910 = vmatprep.subr.bf16.mxu0 0
    %911 = vmatpush1.bf16.msra.mxu0 %v626
    %912 = vmatprep.subr.bf16.mxu0 0
    %913 = vmatpush1.bf16.msra.mxu0 %v625
    %914 = vmatprep.subr.bf16.mxu0 0
    %915 = vmatpush1.bf16.msra.mxu0 %v624
    %916 = vmatprep.subr.bf16.mxu0 0
    %917 = vmatpush1.bf16.msra.mxu0 %v623
    %918 = vmatprep.subr.bf16.mxu0 0
    %919 = vmatpush2.bf16.msra.mxu0 0
    %920 = vmatprep.subr.bf16.mxu0 0
    %921 = vmatpush2.bf16.msra.mxu0 0
    %922 = vmatprep.subr.bf16.mxu0 0
    %923 = vmatpush2.bf16.msra.mxu0 0
    %924 = vmatprep.subr.bf16.mxu0 0
    %925 = vmatpush2.bf16.msra.mxu0 0
    %926 = vmatprep.subr.bf16.mxu0 0
    %927 = vmatpush2.bf16.msra.mxu0 0
    %928 = vmatprep.subr.bf16.mxu0 0
    %929 = vmatpush2.bf16.msra.mxu0 0
    %930 = vmatprep.subr.bf16.mxu0 0
    %931 = vmatpush2.bf16.msra.mxu0 0
    %932 = vmatprep.subr.bf16.mxu0 0
    %933 = vmatpush2.bf16.msra.mxu0 0
    %934 = vmatprep.mubr.bf16.mxu0 0
    %935 = vmatmul.mubr.bf16.gmra.mxu0 %v901
    %v936 = vpop.f32.mrf.mxu0
    %v937 = vadd.f32 0.0, %v936
    %v938 = vpop.f32.mrf.mxu0
    %v939 = vpop.f32.mrf.mxu0
    %v940 = vadd.f32 0.0, %v939
    %v941 = vpop.f32.mrf.mxu0
    %942 = vdwg.mxu0
    %v943 = vadd.f32 %v327, %v937
    %v944 = vadd.f32 %v330, %v940
    %v945 = vmax.f32 %v943, 0.0
    %v946 = vmax.f32 %v944, 0.0
    %v947 = vpack.c.bf16 %v900, %v899
    %948 = vmatprep.subr.bf16.mxu0 0
    %949 = vmatpush1.bf16.msra.mxu0 %v630
    %950 = vmatprep.subr.bf16.mxu0 0
    %951 = vmatpush1.bf16.msra.mxu0 %v629
    %952 = vmatprep.subr.bf16.mxu0 0
    %953 = vmatpush1.bf16.msra.mxu0 %v628
    %954 = vmatprep.subr.bf16.mxu0 0
    %955 = vmatpush1.bf16.msra.mxu0 %v627
    %956 = vmatprep.subr.bf16.mxu0 0
    %957 = vmatpush1.bf16.msra.mxu0 %v626
    %958 = vmatprep.subr.bf16.mxu0 0
    %959 = vmatpush1.bf16.msra.mxu0 %v625
    %960 = vmatprep.subr.bf16.mxu0 0
    %961 = vmatpush1.bf16.msra.mxu0 %v624
    %962 = vmatprep.subr.bf16.mxu0 0
    %963 = vmatpush1.bf16.msra.mxu0 %v623
    %964 = vmatprep.subr.bf16.mxu0 0
    %965 = vmatpush2.bf16.msra.mxu0 0
    %966 = vmatprep.subr.bf16.mxu0 0
    %967 = vmatpush2.bf16.msra.mxu0 0
    %968 = vmatprep.subr.bf16.mxu0 0
    %969 = vmatpush2.bf16.msra.mxu0 0
    %970 = vmatprep.subr.bf16.mxu0 0
    %971 = vmatpush2.bf16.msra.mxu0 0
    %972 = vmatprep.subr.bf16.mxu0 0
    %973 = vmatpush2.bf16.msra.mxu0 0
    %974 = vmatprep.subr.bf16.mxu0 0
    %975 = vmatpush2.bf16.msra.mxu0 0
    %976 = vmatprep.subr.bf16.mxu0 0
    %977 = vmatpush2.bf16.msra.mxu0 0
    %978 = vmatprep.subr.bf16.mxu0 0
    %979 = vmatpush2.bf16.msra.mxu0 0
    %980 = vmatprep.mubr.bf16.mxu0 0
    %981 = vmatmul.mubr.bf16.gmra.mxu0 %v947
    %v982 = vpop.f32.mrf.mxu0
    %v983 = vadd.f32 0.0, %v982
    %v984 = vpop.f32.mrf.mxu0
    %v985 = vpop.f32.mrf.mxu0
    %v986 = vadd.f32 0.0, %v985
    %v987 = vpop.f32.mrf.mxu0
    %988 = vdwg.mxu0
    %v989 = vadd.f32 %v376, %v983
    %v990 = vadd.f32 %v379, %v986
    %v991 = vmax.f32 %v989, 0.0
    %v992 = vmax.f32 %v990, 0.0
    %v993 = vpack.c.bf16 %v946, %v945
    %v994 = vpack.c.bf16 %v992, %v991
    %995 = vmatprep.subr.bf16.mxu0 0
    %996 = vmatpush1.bf16.msra.mxu0 0
    %997 = vmatprep.subr.bf16.mxu0 0
    %998 = vmatpush1.bf16.msra.mxu0 0
    %999 = vmatprep.subr.bf16.mxu0 0
    %1000 = vmatpush1.bf16.msra.mxu0 0
    %1001 = vmatprep.subr.bf16.mxu0 0
    %1002 = vmatpush1.bf16.msra.mxu0 0
    %1003 = vmatprep.subr.bf16.mxu0 0
    %1004 = vmatpush1.bf16.msra.mxu0 0
    %1005 = vmatprep.subr.bf16.mxu0 0
    %1006 = vmatpush1.bf16.msra.mxu0 0
    %1007 = vmatprep.subr.bf16.mxu0 0
    %1008 = vmatpush1.bf16.msra.mxu0 0
    %1009 = vmatprep.subr.bf16.mxu0 0
    %1010 = vmatpush1.bf16.msra.mxu0 %v994
    %1011 = vmatprep.subr.bf16.mxu0 0
    %1012 = vmatpush2.bf16.msra.mxu0 0
    %1013 = vmatprep.subr.bf16.mxu0 0
    %1014 = vmatpush2.bf16.msra.mxu0 0
    %1015 = vmatprep.subr.bf16.mxu0 0
    %1016 = vmatpush2.bf16.msra.mxu0 0
    %1017 = vmatprep.subr.bf16.mxu0 0
    %1018 = vmatpush2.bf16.msra.mxu0 0
    %1019 = vmatprep.subr.bf16.mxu0 0
    %1020 = vmatpush2.bf16.msra.mxu0 0
    %1021 = vmatprep.subr.bf16.mxu0 0
    %1022 = vmatpush2.bf16.msra.mxu0 0
    %1023 = vmatprep.subr.bf16.mxu0 0
    %1024 = vmatpush2.bf16.msra.mxu0 0
    %1025 = vmatprep.subr.bf16.mxu0 0
    %1026 = vmatpush2.bf16.msra.mxu0 0
    %1027 = vmatprep.mubr.bf16.mxu0 0
    %1028 = vmatmul.mubr.bf16.gmra.mxu0 %v395
    %v1029 = vpop.f32.mrf.mxu0
    %v1030 = vadd.f32 0.0, %v1029
    %v1031 = vpop.f32.mrf.mxu0
    %v1032 = vpop.f32.mrf.mxu0
    %v1033 = vadd.f32 0.0, %v1032
    %v1034 = vpop.f32.mrf.mxu0
    %1035 = vdwg.mxu0
    %1036 = vmatprep.subr.bf16.mxu0 0
    %1037 = vmatpush1.bf16.msra.mxu0 0
    %1038 = vmatprep.subr.bf16.mxu0 0
    %1039 = vmatpush1.bf16.msra.mxu0 0
    %1040 = vmatprep.subr.bf16.mxu0 0
    %1041 = vmatpush1.bf16.msra.mxu0 0
    %1042 = vmatprep.subr.bf16.mxu0 0
    %1043 = vmatpush1.bf16.msra.mxu0 0
    %1044 = vmatprep.subr.bf16.mxu0 0
    %1045 = vmatpush1.bf16.msra.mxu0 0
    %1046 = vmatprep.subr.bf16.mxu0 0
    %1047 = vmatpush1.bf16.msra.mxu0 0
    %1048 = vmatprep.subr.bf16.mxu0 0
    %1049 = vmatpush1.bf16.msra.mxu0 0
    %1050 = vmatprep.subr.bf16.mxu0 0
    %1051 = vmatpush1.bf16.msra.mxu0 %v993
    %1052 = vmatprep.subr.bf16.mxu0 0
    %1053 = vmatpush2.bf16.msra.mxu0 0
    %1054 = vmatprep.subr.bf16.mxu0 0
    %1055 = vmatpush2.bf16.msra.mxu0 0
    %1056 = vmatprep.subr.bf16.mxu0 0
    %1057 = vmatpush2.bf16.msra.mxu0 0
    %1058 = vmatprep.subr.bf16.mxu0 0
    %1059 = vmatpush2.bf16.msra.mxu0 0
    %1060 = vmatprep.subr.bf16.mxu0 0
    %1061 = vmatpush2.bf16.msra.mxu0 0
    %1062 = vmatprep.subr.bf16.mxu0 0
    %1063 = vmatpush2.bf16.msra.mxu0 0
    %1064 = vmatprep.subr.bf16.mxu0 0
    %1065 = vmatpush2.bf16.msra.mxu0 0
    %1066 = vmatprep.subr.bf16.mxu0 0
    %1067 = vmatpush2.bf16.msra.mxu0 0
    %1068 = vmatprep.mubr.bf16.mxu0 0
    %1069 = vmatmul.mubr.bf16.gmra.mxu0 %v444
    %v1070 = vpop.f32.mrf.mxu0
    %v1071 = vadd.f32 %v1030, %v1070
    %v1072 = vpop.f32.mrf.mxu0
    %v1073 = vpop.f32.mrf.mxu0
    %v1074 = vadd.f32 %v1033, %v1073
    %v1075 = vpop.f32.mrf.mxu0
    %1076 = vdwg.mxu0
    %v1077 = vld [vmem:[#allocation7] sm:$0xf]
    %v1078 = vld [vmem:[#allocation7 + $0x4] sm:$0xf]
    %v1079 = vld [vmem:[#allocation17] sm:$0xf]
    %v1080 = vld [vmem:[#allocation17 + $0x4] sm:$0xf]
    %v1081 = vld [vmem:[#allocation17 + $0x8] sm:$0xf]
    %v1082 = vld [vmem:[#allocation17 + $0xc] sm:$0xf]
    %v1083 = vld [vmem:[#allocation17 + $0x10] sm:$0xf]
    %v1084 = vld [vmem:[#allocation17 + $0x14] sm:$0xf]
    %v1085 = vld [vmem:[#allocation17 + $0x18] sm:$0xf]
    %v1086 = vld [vmem:[#allocation17 + $0x1c] sm:$0xf]
    %v1087 = vld [vmem:[#allocation17 + $0x20] sm:$0xf]
    %v1088 = vld [vmem:[#allocation17 + $0x24] sm:$0xf]
    %v1089 = vld [vmem:[#allocation17 + $0x28] sm:$0xf]
    %v1090 = vld [vmem:[#allocation17 + $0x2c] sm:$0xf]
    %v1091 = vld [vmem:[#allocation17 + $0x30] sm:$0xf]
    %v1092 = vld [vmem:[#allocation17 + $0x34] sm:$0xf]
    %v1093 = vld [vmem:[#allocation17 + $0x38] sm:$0xf]
    %v1094 = vld [vmem:[#allocation17 + $0x3c] sm:$0xf]
    %v1095 = vpack.c.bf16 %v1074, %v1071
    %v1096 = vld [vmem:[#allocation19] sm:$0xf]
    %v1097 = vld [vmem:[#allocation19 + $0x4] sm:$0xf]
    %v1098 = vld [vmem:[#allocation19 + $0x8] sm:$0xf]
    %v1099 = vld [vmem:[#allocation19 + $0xc] sm:$0xf]
    %v1100 = vld [vmem:[#allocation19 + $0x10] sm:$0xf]
    %v1101 = vld [vmem:[#allocation19 + $0x14] sm:$0xf]
    %v1102 = vld [vmem:[#allocation19 + $0x18] sm:$0xf]
    %v1103 = vld [vmem:[#allocation19 + $0x1c] sm:$0xf]
    %v1104 = vld [vmem:[#allocation19 + $0x20] sm:$0xf]
    %v1105 = vld [vmem:[#allocation19 + $0x24] sm:$0xf]
    %v1106 = vld [vmem:[#allocation19 + $0x28] sm:$0xf]
    %v1107 = vld [vmem:[#allocation19 + $0x2c] sm:$0xf]
    %v1108 = vld [vmem:[#allocation19 + $0x30] sm:$0xf]
    %v1109 = vld [vmem:[#allocation19 + $0x34] sm:$0xf]
    %v1110 = vld [vmem:[#allocation19 + $0x38] sm:$0xf]
    %v1111 = vld [vmem:[#allocation19 + $0x3c] sm:$0xf]
    %v1128 = vunpack.c.l.b16 %v1096
    %v1129 = vunpack.c.l.b16 %v1097
    %v1130 = vunpack.c.l.b16 %v1098
    %v1131 = vunpack.c.l.b16 %v1099
    %v1132 = vunpack.c.l.b16 %v1100
    %v1133 = vunpack.c.l.b16 %v1101
    %v1134 = vunpack.c.l.b16 %v1102
    %v1135 = vunpack.c.l.b16 %v1103
    %v1136 = vunpack.c.l.b16 %v1104
    %v1137 = vunpack.c.l.b16 %v1105
    %v1138 = vunpack.c.l.b16 %v1106
    %v1139 = vunpack.c.l.b16 %v1107
    %v1140 = vunpack.c.l.b16 %v1108
    %v1141 = vunpack.c.l.b16 %v1109
    %v1142 = vunpack.c.l.b16 %v1110
    %v1143 = vunpack.c.l.b16 %v1111
    %v1144 = vpack.c.b16 %v1129, %v1128
    %v1145 = vpack.c.b16 %v1131, %v1130
    %v1146 = vpack.c.b16 %v1133, %v1132
    %v1147 = vpack.c.b16 %v1135, %v1134
    %v1148 = vpack.c.b16 %v1137, %v1136
    %v1149 = vpack.c.b16 %v1139, %v1138
    %v1150 = vpack.c.b16 %v1141, %v1140
    %v1151 = vpack.c.b16 %v1143, %v1142
    %1160 = vmatprep.subr.bf16.mxu0 0
    %1161 = vmatpush1.bf16.msra.mxu0 %v1151
    %1162 = vmatprep.subr.bf16.mxu0 0
    %1163 = vmatpush1.bf16.msra.mxu0 %v1150
    %1164 = vmatprep.subr.bf16.mxu0 0
    %1165 = vmatpush1.bf16.msra.mxu0 %v1149
    %1166 = vmatprep.subr.bf16.mxu0 0
    %1167 = vmatpush1.bf16.msra.mxu0 %v1148
    %1168 = vmatprep.subr.bf16.mxu0 0
    %1169 = vmatpush1.bf16.msra.mxu0 %v1147
    %1170 = vmatprep.subr.bf16.mxu0 0
    %1171 = vmatpush1.bf16.msra.mxu0 %v1146
    %1172 = vmatprep.subr.bf16.mxu0 0
    %1173 = vmatpush1.bf16.msra.mxu0 %v1145
    %1174 = vmatprep.subr.bf16.mxu0 0
    %1175 = vmatpush1.bf16.msra.mxu0 %v1144
    %1176 = vmatprep.subr.bf16.mxu0 0
    %1177 = vmatpush2.bf16.msra.mxu0 0
    %1178 = vmatprep.subr.bf16.mxu0 0
    %1179 = vmatpush2.bf16.msra.mxu0 0
    %1180 = vmatprep.subr.bf16.mxu0 0
    %1181 = vmatpush2.bf16.msra.mxu0 0
    %1182 = vmatprep.subr.bf16.mxu0 0
    %1183 = vmatpush2.bf16.msra.mxu0 0
    %1184 = vmatprep.subr.bf16.mxu0 0
    %1185 = vmatpush2.bf16.msra.mxu0 0
    %1186 = vmatprep.subr.bf16.mxu0 0
    %1187 = vmatpush2.bf16.msra.mxu0 0
    %1188 = vmatprep.subr.bf16.mxu0 0
    %1189 = vmatpush2.bf16.msra.mxu0 0
    %1190 = vmatprep.subr.bf16.mxu0 0
    %1191 = vmatpush2.bf16.msra.mxu0 0
    %1192 = vmatprep.mubr.bf16.mxu0 0
    %1193 = vmatmul.mubr.bf16.gmra.mxu0 %v1095
    %v1194 = vpop.f32.mrf.mxu0
    %v1195 = vadd.f32 0.0, %v1194
    %v1196 = vpop.f32.mrf.mxu0
    %v1197 = vpop.f32.mrf.mxu0
    %v1198 = vadd.f32 0.0, %v1197
    %v1199 = vpop.f32.mrf.mxu0
    %1200 = vdwg.mxu0
    %v1203 = vunpack.c.l.b16 %v1077
    %v1204 = vunpack.c.l.b16 %v1078
    %v1205 = vpack.c.b16 %v1204, %v1203
    %v1223 = vunpack.c.l.b16 %v1079
    %v1224 = vunpack.c.l.b16 %v1080
    %v1225 = vunpack.c.l.b16 %v1081
    %v1226 = vunpack.c.l.b16 %v1082
    %v1227 = vunpack.c.l.b16 %v1083
    %v1228 = vunpack.c.l.b16 %v1084
    %v1229 = vunpack.c.l.b16 %v1085
    %v1230 = vunpack.c.l.b16 %v1086
    %v1231 = vunpack.c.l.b16 %v1087
    %v1232 = vunpack.c.l.b16 %v1088
    %v1233 = vunpack.c.l.b16 %v1089
    %v1234 = vunpack.c.l.b16 %v1090
    %v1235 = vunpack.c.l.b16 %v1091
    %v1236 = vunpack.c.l.b16 %v1092
    %v1237 = vunpack.c.l.b16 %v1093
    %v1238 = vunpack.c.l.b16 %v1094
    %v1239 = vpack.c.b16 %v1224, %v1223
    %v1240 = vpack.c.b16 %v1226, %v1225
    %v1241 = vpack.c.b16 %v1228, %v1227
    %v1242 = vpack.c.b16 %v1230, %v1229
    %v1243 = vpack.c.b16 %v1232, %v1231
    %v1244 = vpack.c.b16 %v1234, %v1233
    %v1245 = vpack.c.b16 %v1236, %v1235
    %v1246 = vpack.c.b16 %v1238, %v1237
    %1255 = vmatprep.subr.bf16.mxu0 0
    %1256 = vmatpush1.bf16.msra.mxu0 %v1246
    %1257 = vmatprep.subr.bf16.mxu0 0
    %1258 = vmatpush1.bf16.msra.mxu0 %v1245
    %1259 = vmatprep.subr.bf16.mxu0 0
    %1260 = vmatpush1.bf16.msra.mxu0 %v1244
    %1261 = vmatprep.subr.bf16.mxu0 0
    %1262 = vmatpush1.bf16.msra.mxu0 %v1243
    %1263 = vmatprep.subr.bf16.mxu0 0
    %1264 = vmatpush1.bf16.msra.mxu0 %v1242
    %1265 = vmatprep.subr.bf16.mxu0 0
    %1266 = vmatpush1.bf16.msra.mxu0 %v1241
    %1267 = vmatprep.subr.bf16.mxu0 0
    %1268 = vmatpush1.bf16.msra.mxu0 %v1240
    %1269 = vmatprep.subr.bf16.mxu0 0
    %1270 = vmatpush1.bf16.msra.mxu0 %v1239
    %1271 = vmatprep.subr.bf16.mxu0 0
    %1272 = vmatpush2.bf16.msra.mxu0 0
    %1273 = vmatprep.subr.bf16.mxu0 0
    %1274 = vmatpush2.bf16.msra.mxu0 0
    %1275 = vmatprep.subr.bf16.mxu0 0
    %1276 = vmatpush2.bf16.msra.mxu0 0
    %1277 = vmatprep.subr.bf16.mxu0 0
    %1278 = vmatpush2.bf16.msra.mxu0 0
    %1279 = vmatprep.subr.bf16.mxu0 0
    %1280 = vmatpush2.bf16.msra.mxu0 0
    %1281 = vmatprep.subr.bf16.mxu0 0
    %1282 = vmatpush2.bf16.msra.mxu0 0
    %1283 = vmatprep.subr.bf16.mxu0 0
    %1284 = vmatpush2.bf16.msra.mxu0 0
    %1285 = vmatprep.subr.bf16.mxu0 0
    %1286 = vmatpush2.bf16.msra.mxu0 0
    %1287 = vmatprep.mubr.bf16.mxu0 0
    %1288 = vmatmul.mubr.bf16.gmra.mxu0 %v1205
    %v1289 = vpop.f32.mrf.mxu0
    %v1290 = vadd.f32 %v1195, %v1289
    %v1291 = vpop.f32.mrf.mxu0
    %v1292 = vpop.f32.mrf.mxu0
    %v1293 = vadd.f32 %v1198, %v1292
    %v1294 = vpop.f32.mrf.mxu0
    %1295 = vdwg.mxu0
    %v1296 = vld [vmem:[%s12] sm:$0x1]
    %v1298 = vlaneseq
    %v1299 = vshrl.u32 %v1298, 7
    %v1300 = vsub.s32 0, %v1299
    %v1301 = vrot.slane %v1296, %v1300
    %v1303 = vadd.f32 %v1290, %v1301
    %v1304 = vadd.f32 %v1293, %v1301
    %1305 = vst [vmem:[#allocation21] sm:$0xff] %v1303
    %1306 = vst [vmem:[#allocation21 + $0x8] sm:$0xff] %v1304
    %v1307 = vld [vmem:[#allocation13] sm:$0xff]
    %v1309 = vsel %vm393, %v1307, 0
    %1311 = vmatprep.subr.mxu0 0.0
    %1312 = vmatpush1.msra.mxu0 0.0
    %1313 = vmatprep.subr.mxu0 0.0
    %1314 = vmatpush1.msra.mxu0 0.0
    %1315 = vmatprep.subr.mxu0 0.0
    %1316 = vmatpush1.msra.mxu0 0.0
    %1317 = vmatprep.subr.mxu0 0.0
    %1318 = vmatpush1.msra.mxu0 0.0
    %1319 = vmatprep.subr.mxu0 0.0
    %1320 = vmatpush1.msra.mxu0 0.0
    %1321 = vmatprep.subr.mxu0 0.0
    %1322 = vmatpush1.msra.mxu0 0.0
    %1323 = vmatprep.subr.mxu0 0.0
    %1324 = vmatpush1.msra.mxu0 0.0
    %1325 = vmatprep.subr.mxu0 0.0
    %1326 = vmatpush1.msra.mxu0 0.0
    %1327 = vmatprep.subr.mxu0 0.0
    %1328 = vmatpush1.msra.mxu0 0.0
    %1329 = vmatprep.subr.mxu0 0.0
    %1330 = vmatpush1.msra.mxu0 0.0
    %1331 = vmatprep.subr.mxu0 0.0
    %1332 = vmatpush1.msra.mxu0 0.0
    %1333 = vmatprep.subr.mxu0 0.0
    %1334 = vmatpush1.msra.mxu0 0.0
    %1335 = vmatprep.subr.mxu0 0.0
    %1336 = vmatpush1.msra.mxu0 0.0
    %1337 = vmatprep.subr.mxu0 0.0
    %1338 = vmatpush1.msra.mxu0 0.0
    %1339 = vmatprep.subr.mxu0 0.0
    %1340 = vmatpush1.msra.mxu0 %v1304
    %1341 = vmatprep.subr.mxu0 0.0
    %1342 = vmatpush1.msra.mxu0 %v1303
    %1343 = vmatprep.subr.mxu0 0.0
    %1344 = vmatpush2.msra.mxu0 0.0
    %1345 = vmatprep.subr.mxu0 0.0
    %1346 = vmatpush2.msra.mxu0 0.0
    %1347 = vmatprep.subr.mxu0 0.0
    %1348 = vmatpush2.msra.mxu0 0.0
    %1349 = vmatprep.subr.mxu0 0.0
    %1350 = vmatpush2.msra.mxu0 0.0
    %1351 = vmatprep.subr.mxu0 0.0
    %1352 = vmatpush2.msra.mxu0 0.0
    %1353 = vmatprep.subr.mxu0 0.0
    %1354 = vmatpush2.msra.mxu0 0.0
    %1355 = vmatprep.subr.mxu0 0.0
    %1356 = vmatpush2.msra.mxu0 0.0
    %1357 = vmatprep.subr.mxu0 0.0
    %1358 = vmatpush2.msra.mxu0 0.0
    %1359 = vmatprep.subr.mxu0 0.0
    %1360 = vmatpush2.msra.mxu0 0.0
    %1361 = vmatprep.subr.mxu0 0.0
    %1362 = vmatpush2.msra.mxu0 0.0
    %1363 = vmatprep.subr.mxu0 0.0
    %1364 = vmatpush2.msra.mxu0 0.0
    %1365 = vmatprep.subr.mxu0 0.0
    %1366 = vmatpush2.msra.mxu0 0.0
    %1367 = vmatprep.subr.mxu0 0.0
    %1368 = vmatpush2.msra.mxu0 0.0
    %1369 = vmatprep.subr.mxu0 0.0
    %1370 = vmatpush2.msra.mxu0 0.0
    %1371 = vmatprep.subr.mxu0 0.0
    %1372 = vmatpush2.msra.mxu0 0.0
    %1373 = vmatprep.subr.mxu0 0.0
    %1374 = vmatpush2.msra.mxu0 0.0
    %1375 = vmatprep.mubr.f32.mxu0 0.0
    %1376 = vmatmul.mubr.f32.gmra.mxu0 %v1309
    %v1377 = vpop.f32.mrf.mxu0
    %v1378 = vadd.f32 0.0, %v1377
    %v1379 = vpop.f32.mrf.mxu0
    %1380 = vdwg.mxu0
    %1381 = vst [vmem:[#allocation20] sm:$0xff] %v1378
    // Predicated region
    $region98: #{tpu_custom_call.1} parent=1 // pred_check
      _
    $region99: #{tpu_custom_call.1} parent=1 // pred_check_branch
      %1383 = sbr.rel (0) target = $region101
    $region100: #{tpu_custom_call.1} parent=1 // pred_region
      %s1385 = ssub.s32 128, 128
      %1386 = vsyncadd [#allocation4], %s1385
      %s1388 = sshll.u32 [#allocation20], 4
      %s1389 = int_to_ptr.vmem [resolvable:$true] %s1388
      %1391 = dma.vmem_to_hbm [thread:$0]  %s1389, 128, %s13, [#allocation4]
    $region101: #{tpu_custom_call.1} parent=1 // pred_fallthru
      _
    // Predicated region
    $region102: #{tpu_custom_call.1} parent=1 // pred_check
      _
    $region103: #{tpu_custom_call.1} parent=1 // pred_check_branch
      %1393 = sbr.rel (0) target = $region105
    $region104: #{tpu_custom_call.1} parent=1 // pred_region
      %s1395 = ssub.s32 256, 256
      %1396 = vsyncadd [#allocation22], %s1395
      %s1397 = sshll.u32 [#allocation21], 4
      %s1398 = int_to_ptr.vmem [resolvable:$true] %s1397
      %1403 = dma.vmem_to_hbm [thread:$0]  %s1398, 256, %s14, [#allocation22], 128, 128, 8
    $region105: #{tpu_custom_call.1} parent=1 // pred_fallthru
      _
    // Predicated region
    $region106: #{tpu_custom_call.1} parent=1 // pred_check
      _
    $region107: #{tpu_custom_call.1} parent=1 // pred_check_branch
      %1405 = sbr.rel (0) target = $region109
    $region108: #{tpu_custom_call.1} parent=1 // pred_region
      %1406 = dma.done [#allocation4], 128
    $region109: #{tpu_custom_call.1} parent=1 // pred_fallthru
      _
    // Predicated region
    $region110: #{tpu_custom_call.1} parent=1 // pred_check
      _
    $region111: #{tpu_custom_call.1} parent=1 // pred_check_branch
      %1408 = sbr.rel (0) target = $region113
    $region112: #{tpu_custom_call.1} parent=1 // pred_region
      %1409 = dma.done [#allocation22], 256
    $region113: #{tpu_custom_call.1} parent=1 // pred_fallthru
      _
    %1410 = vsyncpa [#allocation3], 1
    %1411 = vsyncpa [#allocation6], 1
    %1412 = vsyncpa [#allocation9], 1
    %1413 = vsyncpa [#allocation12], 1
    %1414 = vsyncpa [#allocation15], 1
    %1415 = vsyncpa [#allocation18], 1
    %1416 = vsyncpa [#allocation4], 1
    %1417 = vsyncpa [#allocation22], 1

</llo_original>
